<compile_context>
chip_gen: v7x
topology: tpu7x:2x2x1
jax: 0.10.0
libtpu: 0.0.40
codegen_flags: <defaults>
</compile_context>

<pallas_src>
import functools

import jax
import jax.numpy as jnp
from jax.experimental import pallas as pl
from jax.experimental.pallas import tpu as pltpu


def _refattention_kernel(scal_ref, q_ref, v_ref, out_ref, beta_ref, kn_ref,
                         *, n_valid, tq):
    """One (batch, query-row-tile) grid step.

    scal_ref : SMEM f32[3]  = [beta_gamma, w0, w1]
    q_ref    : VMEM (1, C,  n_pad)  x (q == k), resident per batch block
    v_ref    : VMEM (1, Cv, n_pad)  v,          resident per batch block
    out_ref  : VMEM (1, Cv, tq)     output tile
    beta_ref : VMEM (1, tq, n_pad)  attention-row tile
    kn_ref   : VMEM (C, n_pad)      scratch: L2-normalized keys (per batch)
    """
    beta_gamma = scal_ref[0]
    w0 = scal_ref[1]
    w1 = scal_ref[2]
    r = pl.program_id(1)
    n_pad = kn_ref.shape[-1]

    # Normalize keys once per batch block; the row axis is "arbitrary", so
    # r == 0 always runs before the other row tiles of the same batch block.
    @pl.when(r == 0)
    def _():
        q = q_ref[0]                                              # (C, n_pad)
        kn_ref[...] = q * jax.lax.rsqrt(
            jnp.sum(q * q, axis=0, keepdims=True) + 1e-6)

    start = pl.multiple_of(r * tq, tq)
    kn = kn_ref[...]                                              # (C, n_pad)
    # q == k: the query tile is a slice of the normalized keys; fold the
    # beta_gamma logit scale into this small (C, tq) operand.
    qt = kn_ref[:, pl.ds(start, tq)] * beta_gamma                 # (C, tq)

    # logits[i, j] = sum_c qt[c, i] * kn[c, j]
    s = jax.lax.dot_general(qt, kn, (((0,), (0,)), ((), ())),
                            preferred_element_type=jnp.float32)   # (tq, n_pad)
    if n_pad != n_valid:  # static branch: mask the zero-padded key columns
        col = jax.lax.broadcasted_iota(jnp.int32, s.shape, 1)
        s = jnp.where(col < n_valid, s, -1e30)

    # Row softmax with a single (exact) reciprocal per row.
    m = jnp.max(s, axis=-1, keepdims=True)
    p = jnp.exp(s - m)
    beta = p * pl.reciprocal(jnp.sum(p, axis=-1, keepdims=True))  # (tq, n_pad)
    beta_ref[0] = beta.astype(beta_ref.dtype)

    # o[c, i] = sum_j v[c, j] * beta[i, j]  (NT form: beta is the rhs, no
    # explicit transpose of the big probability tile).
    v = v_ref[0]                                                  # (Cv, n_pad)
    o = jax.lax.dot_general(v, beta, (((1,), (1,)), ((), ())),
                            preferred_element_type=jnp.float32)   # (Cv, tq)
    res = w0 * o + w1 * v_ref[0, :, pl.ds(start, tq)]
    out_ref[0] = res.astype(out_ref.dtype)


def refattention_forward(x, v, params, pos=None, *, tq=None,
                         beta_dtype=jnp.float32):
    """x: (B, C, H, W), v: (B, Cv, H, W), params: dict of scalar parameters.

    Returns (out, beta) exactly as the PyTorch module:
      out  : (B, Cv, H, W)         float32
      beta : (B, H*W, H, W)        beta_dtype (float32 default; bf16 halves
                                   the dominant HBM write at reduced precision)
    """
    B, C, H, W = x.shape
    Cv = v.shape[1]
    N = H * W

    qk = x + params["gamma"] * pos if pos is not None else x
    qf = qk.reshape(B, C, N).astype(jnp.float32)
    vf = v.reshape(B, Cv, N).astype(jnp.float32)

    # Zero-pad the spatial (lane) axis to a multiple of 128 so every store and
    # matmul operand is lane-dense; padded key columns are masked in-kernel.
    n_pad = ((N + 127) // 128) * 128
    if n_pad != N:
        qf = jnp.pad(qf, ((0, 0), (0, 0), (0, n_pad - N)))
        vf = jnp.pad(vf, ((0, 0), (0, 0), (0, n_pad - N)))

    # --- per-generation tile size & VMEM budget ------------------------------
    try:
        vmem_cap = int(getattr(pltpu.get_tpu_info(), "vmem_capacity_bytes",
                               64 * 1024 * 1024))
    except Exception:
        vmem_cap = 64 * 1024 * 1024
    vmem_cap = max(vmem_cap, 32 * 1024 * 1024)
    # ~52 MiB usable on 128 MiB parts (v5e/v6e), ~20 MiB on 64 MiB v7x.
    budget = (vmem_cap - 24 * 1024 * 1024) // 2

    def vmem_est(tq_):
        # double-buffered in/out blocks + kn scratch + softmax intermediates
        return 4 * (3 * C * n_pad + 2 * Cv * n_pad + 2 * Cv * tq_
                    + 5 * tq_ * n_pad)

    if tq is None:
        tq = 128
        cand = min(n_pad, 2048)
        while cand >= 256:
            if n_pad % cand == 0 and vmem_est(cand) <= budget:
                tq = cand
                break
            cand -= 128
    assert tq % 128 == 0 and n_pad % tq == 0, "tq must be a 128-multiple divisor of n_pad"
    # TODO(synk): the key/value axis is not tiled (all keys stay VMEM-resident);
    # a flash-style key-axis grid with online softmax would lift the large-N
    # VMEM limit, especially on v7x (64 MiB).

    vmem_limit = int(min(vmem_cap - 24 * 1024 * 1024,
                         max(2 * vmem_est(tq) + 8 * 1024 * 1024,
                             32 * 1024 * 1024)))

    e0 = jnp.exp(params["sum_gamma0"])
    e1 = jnp.exp(params["sum_gamma1"])
    denom = e0 + e1
    scal = jnp.stack([params["beta_gamma"], e0 / denom, e1 / denom]
                     ).astype(jnp.float32)

    grid = (B, n_pad // tq)
    kernel = functools.partial(_refattention_kernel, n_valid=N, tq=tq)

    out_p, beta_p = pl.pallas_call(
        kernel,
        out_shape=(
            jax.ShapeDtypeStruct((B, Cv, n_pad), jnp.float32),
            # Row extent is the true N: padded query rows are masked by the
            # pipeline instead of written out and sliced off afterwards.
            jax.ShapeDtypeStruct((B, N, n_pad), beta_dtype),
        ),
        grid_spec=pltpu.PrefetchScalarGridSpec(
            num_scalar_prefetch=1,
            grid=grid,
            in_specs=[
                pl.BlockSpec((1, C, n_pad), lambda b, r, s: (b, 0, 0)),   # x (q==k)
                pl.BlockSpec((1, Cv, n_pad), lambda b, r, s: (b, 0, 0)),  # v
            ],
            out_specs=(
                pl.BlockSpec((1, Cv, tq), lambda b, r, s: (b, 0, r)),     # out
                pl.BlockSpec((1, tq, n_pad), lambda b, r, s: (b, r, 0)),  # beta
            ),
            scratch_shapes=[pltpu.VMEM((C, n_pad), jnp.float32)],
        ),
        compiler_params=pltpu.CompilerParams(
            dimension_semantics=("parallel", "arbitrary"),
            vmem_limit_bytes=vmem_limit,
        ),
    )(scal, qf, vf)

    out = out_p[:, :, :N] if n_pad != N else out_p
    beta = beta_p[:, :, :N] if n_pad != N else beta_p
    return out.reshape(B, Cv, H, W), beta.reshape(B, N, H, W)


def refattention_reference(x, v, params, pos=None):
    """Pure-JAX reference mirroring the PyTorch forward exactly."""
    B, C, H, W = x.shape
    Cv = v.shape[1]
    N = H * W
    q = x if pos is None else x + params["gamma"] * pos
    k = q

    def l2n(a):  # L2normalize over dim=1, eps inside the sqrt
        return a / jnp.sqrt(jnp.sum(a * a, axis=1, keepdims=True) + 1e-6)

    qn = l2n(q).reshape(B, C, N)
    kn = l2n(k).reshape(B, C, N)
    vf = v.reshape(B, Cv, N)
    s = jnp.einsum("bcn,bcm->bnm", qn, kn) * params["beta_gamma"]
    beta = jax.nn.softmax(s, axis=-1)
    o = jnp.einsum("bcm,bnm->bcn", vf, beta)
    e0, e1 = jnp.exp(params["sum_gamma0"]), jnp.exp(params["sum_gamma1"])
    out = e0 / (e0 + e1) * o + e1 / (e0 + e1) * vf
    return out.reshape(B, Cv, H, W), beta.reshape(B, N, H, W)


if __name__ == "__main__":
    base_params = {
        "gamma": jnp.float32(0.0),
        "beta_gamma": jnp.float32(10.0),
        "sum_gamma0": jnp.float32(0.0),
        "sum_gamma1": jnp.float32(0.0),
    }
    # TODO(synk): conv_q / conv_k / norm1 are declared in __init__ but unused
    # in forward(); omitted here.

    key = jax.random.PRNGKey(0)

    # Case 1: N = 256 (lane-dense, no padding / masking), Cv == C.
    k1, k2, key = jax.random.split(key, 3)
    B, C, H, W = 2, 4, 16, 16
    x = jax.random.normal(k1, (B, C, H, W), dtype=jnp.float32)
    v = jax.random.normal(k2, (B, C, H, W), dtype=jnp.float32)
    out, beta = refattention_forward(x, v, base_params)
    out = jax.block_until_ready(out)
    beta = jax.block_until_ready(beta)
    out_r, beta_r = refattention_reference(x, v, base_params)
    assert out.shape == (B, C, H, W) and beta.shape == (B, H * W, H, W)
    assert jnp.allclose(out, out_r, atol=1e-4, rtol=1e-4)
    assert jnp.allclose(beta, beta_r, atol=1e-4, rtol=1e-4)

    # Case 2: N = 64 (padded to 128, masked edge row tile), Cv != C, with pos.
    k1, k2, k3, key = jax.random.split(key, 4)
    B, C, Cv, H, W = 2, 4, 8, 8, 8
    params2 = dict(base_params)
    params2["gamma"] = jnp.float32(0.3)
    params2["sum_gamma0"] = jnp.float32(0.2)
    params2["sum_gamma1"] = jnp.float32(-0.1)
    x = jax.random.normal(k1, (B, C, H, W), dtype=jnp.float32)
    v = jax.random.normal(k2, (B, Cv, H, W), dtype=jnp.float32)
    pos = jax.random.normal(k3, (B, C, H, W), dtype=jnp.float32)
    out, beta = refattention_forward(x, v, params2, pos=pos)
    out = jax.block_until_ready(out)
    beta = jax.block_until_ready(beta)
    out_r, beta_r = refattention_reference(x, v, params2, pos=pos)
    assert out.shape == (B, Cv, H, W) and beta.shape == (B, H * W, H, W)
    assert jnp.allclose(out, out_r, atol=1e-4, rtol=1e-4)
    assert jnp.allclose(beta, beta_r, atol=1e-4, rtol=1e-4)

    print("KERNEL_OK")
</pallas_src>

<mosaic_0001>
module attributes {stable_mosaic.version = 11 : i64} {
  func.func @_refattention_kernel(%arg0: i32, %arg1: i32, %arg2: memref<3xf32, #tpu.memory_space<smem>>, %arg3: memref<1x4x256xf32, #tpu.memory_space<vmem>>, %arg4: memref<1x4x256xf32, #tpu.memory_space<vmem>>, %arg5: memref<1x4x256xf32, #tpu.memory_space<vmem>>, %arg6: memref<1x256x256xf32, #tpu.memory_space<vmem>>, %arg7: memref<4x256xf32, #tpu.memory_space<vmem>>) attributes {dimension_semantics = [#tpu.dimension_semantics<parallel>, #tpu.dimension_semantics<arbitrary>], iteration_bounds = array<i64: 2, 1>, scalar_prefetch = 1 : i64, scratch_operands = 1 : i64, tpu.core_type = #tpu.core_type<tc>, window_params = [{transform_indices = @transform_0, window_bounds = array<i64: 1, 4, 256>}, {transform_indices = @transform_1, window_bounds = array<i64: 1, 4, 256>}, {transform_indices = @transform_2, window_bounds = array<i64: 1, 4, 256>}, {transform_indices = @transform_3, window_bounds = array<i64: 1, 256, 256>}]} {
    %c0 = arith.constant 0 : index
    %0 = memref.load %arg2[%c0] : memref<3xf32, #tpu.memory_space<smem>>
    %c1 = arith.constant 1 : index
    %1 = memref.load %arg2[%c1] : memref<3xf32, #tpu.memory_space<smem>>
    %c2 = arith.constant 2 : index
    %2 = memref.load %arg2[%c2] : memref<3xf32, #tpu.memory_space<smem>>
    %c0_i32 = arith.constant 0 : i32
    %3 = arith.cmpi eq, %arg1, %c0_i32 : i32
    %4 = arith.extui %3 : i1 to i32
    %c0_i32_0 = arith.constant 0 : i32
    %5 = arith.cmpi ne, %4, %c0_i32_0 : i32
    scf.if %5 {
      %c0_18 = arith.constant 0 : index
      %c0_19 = arith.constant 0 : index
      %c0_20 = arith.constant 0 : index
      %41 = vector.load %arg3[%c0_18, %c0_19, %c0_20] : memref<1x4x256xf32, #tpu.memory_space<vmem>>, vector<1x4x256xf32>
      %42 = vector.shape_cast %41 : vector<1x4x256xf32> to vector<4x256xf32>
      %43 = arith.mulf %42, %42 : vector<4x256xf32>
      %cst_21 = arith.constant dense<0.000000e+00> : vector<256xf32>
      %44 = vector.multi_reduction <add>, %43, %cst_21 [0] : vector<4x256xf32> to vector<256xf32>
      %45 = vector.shape_cast %44 : vector<256xf32> to vector<1x256xf32>
      %cst_22 = arith.constant 9.99999997E-7 : f32
      %46 = vector.broadcast %cst_22 : f32 to vector<1x256xf32>
      %47 = arith.addf %45, %46 : vector<1x256xf32>
      %48 = math.rsqrt %47 : vector<1x256xf32>
      %49 = vector.broadcast %48 : vector<1x256xf32> to vector<4x256xf32>
      %50 = arith.mulf %42, %49 : vector<4x256xf32>
      %c0_23 = arith.constant 0 : index
      %c0_24 = arith.constant 0 : index
      %51 = vector.load %arg7[%c0_23, %c0_24] : memref<4x256xf32, #tpu.memory_space<vmem>>, vector<4x256xf32>
      tpu.vector_store %arg7[%c0_23, %c0_24], %50 {strides = array<i32>} : memref<4x256xf32, #tpu.memory_space<vmem>>, vector<4x256xf32>,
    } else {
    }
    %c256_i32 = arith.constant 256 : i32
    %6 = arith.muli %arg1, %c256_i32 : i32
    %7 = tpu.assume_multiple %6, 256 : i32
    %c0_1 = arith.constant 0 : index
    %c0_2 = arith.constant 0 : index
    %8 = vector.load %arg7[%c0_1, %c0_2] : memref<4x256xf32, #tpu.memory_space<vmem>>, vector<4x256xf32>
    %c0_3 = arith.constant 0 : index
    %9 = arith.index_cast %7 : i32 to index
    %10 = vector.load %arg7[%c0_3, %9] : memref<4x256xf32, #tpu.memory_space<vmem>>, vector<4x256xf32>
    %11 = vector.broadcast %0 : f32 to vector<4x256xf32>
    %12 = arith.mulf %10, %11 : vector<4x256xf32>
    %cst = arith.constant dense<0.000000e+00> : vector<256x256xf32>
    %13 = tpu.matmul %12, %8, %cst {dimension_numbers = #tpu.dot_dimension_numbers<[0], [0], [1], [1], [0, 1, 1, 1], [], []>} : vector<4x256xf32>, vector<4x256xf32>, vector<256x256xf32> -> vector<256x256xf32>
    %cst_4 = arith.constant dense<0xFF800000> : vector<256xf32>
    %14 = vector.multi_reduction <maximumf>, %13, %cst_4 [1] : vector<256x256xf32> to vector<256xf32>
    %15 = vector.shape_cast %14 : vector<256xf32> to vector<256x1xf32>
    %16 = vector.broadcast %15 : vector<256x1xf32> to vector<256x256xf32>
    %17 = arith.subf %13, %16 : vector<256x256xf32>
    %18 = math.exp %17 : vector<256x256xf32>
    %cst_5 = arith.constant dense<0.000000e+00> : vector<256xf32>
    %19 = vector.multi_reduction <add>, %18, %cst_5 [1] : vector<256x256xf32> to vector<256xf32>
    %20 = vector.shape_cast %19 : vector<256xf32> to vector<256x1xf32>
    %21 = tpu.reciprocal %20 : vector<256x1xf32> -> vector<256x1xf32>
    %22 = vector.broadcast %21 : vector<256x1xf32> to vector<256x256xf32>
    %23 = arith.mulf %18, %22 : vector<256x256xf32>
    %c0_6 = arith.constant 0 : index
    %c0_7 = arith.constant 0 : index
    %c0_8 = arith.constant 0 : index
    %24 = vector.load %arg6[%c0_6, %c0_7, %c0_8] : memref<1x256x256xf32, #tpu.memory_space<vmem>>, vector<1x256x256xf32>
    %25 = vector.shape_cast %24 : vector<1x256x256xf32> to vector<256x256xf32>
    %26 = vector.shape_cast %23 : vector<256x256xf32> to vector<1x256x256xf32>
    tpu.vector_store %arg6[%c0_6, %c0_7, %c0_8], %26 {strides = array<i32>} : memref<1x256x256xf32, #tpu.memory_space<vmem>>, vector<1x256x256xf32>,
    %c0_9 = arith.constant 0 : index
    %c0_10 = arith.constant 0 : index
    %c0_11 = arith.constant 0 : index
    %27 = vector.load %arg4[%c0_9, %c0_10, %c0_11] : memref<1x4x256xf32, #tpu.memory_space<vmem>>, vector<1x4x256xf32>
    %28 = vector.shape_cast %27 : vector<1x4x256xf32> to vector<4x256xf32>
    %cst_12 = arith.constant dense<0.000000e+00> : vector<4x256xf32>
    %29 = tpu.matmul %28, %23, %cst_12 {dimension_numbers = #tpu.dot_dimension_numbers<[1], [1], [0], [0], [0, 0, 1, 0], [], []>} : vector<4x256xf32>, vector<256x256xf32>, vector<4x256xf32> -> vector<4x256xf32>
    %30 = vector.broadcast %1 : f32 to vector<4x256xf32>
    %31 = arith.mulf %30, %29 : vector<4x256xf32>
    %c0_13 = arith.constant 0 : index
    %c0_14 = arith.constant 0 : index
    %32 = arith.index_cast %7 : i32 to index
    %33 = vector.load %arg4[%c0_13, %c0_14, %32] : memref<1x4x256xf32, #tpu.memory_space<vmem>>, vector<1x4x256xf32>
    %34 = vector.shape_cast %33 : vector<1x4x256xf32> to vector<4x256xf32>
    %35 = vector.broadcast %2 : f32 to vector<4x256xf32>
    %36 = arith.mulf %35, %34 : vector<4x256xf32>
    %37 = arith.addf %31, %36 : vector<4x256xf32>
    %c0_15 = arith.constant 0 : index
    %c0_16 = arith.constant 0 : index
    %c0_17 = arith.constant 0 : index
    %38 = vector.load %arg5[%c0_15, %c0_16, %c0_17] : memref<1x4x256xf32, #tpu.memory_space<vmem>>, vector<1x4x256xf32>
    %39 = vector.shape_cast %38 : vector<1x4x256xf32> to vector<4x256xf32>
    %40 = vector.shape_cast %37 : vector<4x256xf32> to vector<1x4x256xf32>
    tpu.vector_store %arg5[%c0_15, %c0_16, %c0_17], %40 {strides = array<i32>} : memref<1x4x256xf32, #tpu.memory_space<vmem>>, vector<1x4x256xf32>,
    return
  }
  func.func @transform_0(%arg0: i32, %arg1: i32, %arg2: memref<3xf32, #tpu.memory_space<smem>>) -> (i32, i32, i32) {
    %c0_i32 = arith.constant 0 : i32
    %c0_i32_0 = arith.constant 0 : i32
    %c0_i32_1 = arith.constant 0 : i32
    return %arg0, %c0_i32, %c0_i32_0 : i32, i32, i32
  }
  func.func @transform_1(%arg0: i32, %arg1: i32, %arg2: memref<3xf32, #tpu.memory_space<smem>>) -> (i32, i32, i32) {
    %c0_i32 = arith.constant 0 : i32
    %c0_i32_0 = arith.constant 0 : i32
    %c0_i32_1 = arith.constant 0 : i32
    return %arg0, %c0_i32, %c0_i32_0 : i32, i32, i32
  }
  func.func @transform_2(%arg0: i32, %arg1: i32, %arg2: memref<3xf32, #tpu.memory_space<smem>>) -> (i32, i32, i32) {
    %c0_i32 = arith.constant 0 : i32
    %c0_i32_0 = arith.constant 0 : i32
    return %arg0, %c0_i32, %arg1 : i32, i32, i32
  }
  func.func @transform_3(%arg0: i32, %arg1: i32, %arg2: memref<3xf32, #tpu.memory_space<smem>>) -> (i32, i32, i32) {
    %c0_i32 = arith.constant 0 : i32
    %c0_i32_0 = arith.constant 0 : i32
    return %arg0, %arg1, %c0_i32 : i32, i32, i32
  }
}

</mosaic_0001>

<llo_original>
// kernel: tpu_custom_call.1
$region0: #{tpu_custom_call.1}
  #allocation0 [shape = 'u32[]', space=smem, size = 0x4, offset = 0x4, fixed_abs, tag = 'smem constant byte address 0x4 - core index']
  #allocation1 [shape = 'u32[144,128]{1,0:T(1,128)}', space=vmem, size = 0x12000, scoped, tag = 'internal scratch']
  #allocation2 [shape = 'f32[4,256]{1,0:T(4,128)}', space=vmem, size = 0x1000, scoped, tag = 'scratch operand']
  #allocation3 [shape = 's32[1]{0}', space=sflag, size = 0x4, scoped, tag = 'scoped memory for tpu_custom_call.1']
  #allocation4 [shape = 'u8[512]{0}', space=smem, size = 0x200, scoped, tag = 'prefetched SMEM operand 0']
  %s0 = inlined_call_operand.hbm [shape: f32[3], index: 0, kind: input, shape index: {}]
  %s1 = inlined_call_operand.hbm [shape: f32[2,4,256], index: 1, kind: input, shape index: {}]
  %s2 = inlined_call_operand.hbm [shape: f32[2,4,256], index: 2, kind: input, shape index: {}]
  %s3 = inlined_call_operand.hbm [shape: f32[2,4,256], index: 3, kind: output, shape index: {0}]
  %s4 = inlined_call_operand.hbm [shape: f32[2,256,256], index: 4, kind: output, shape index: {1}]
  %5 = xla_tuple %s3, %s4
  %s6 = sld [smem:[#allocation0]]
  $region61: #{tpu_custom_call.1} parent=0
    _
  %s8 = ssub.s32 1, %s6
  %s9 = scalar_select 0, %s8, %s6
  %11 = dma.hbm_to_smem %s0, 16, [#allocation4], [#allocation3]
  %12 = dma.done [#allocation3], 16
  %13 = sfence
  $region1: #{tpu_custom_call.1} parent=0
    #allocation5 [shape = 'u8[8192]{0}', space=vmem, size = 0x2000, scoped, tag = 'input window, operand 1']
    #allocation6 [shape = 's32[2]{0}', space=sflag, size = 0x8, scoped, tag = 'scoped memory for tpu_custom_call.1']
    #allocation7 [shape = 's32[2]{0}', space=sflag, size = 0x8, scoped, tag = 'scoped memory for tpu_custom_call.1']
    #allocation8 [shape = 'u8[8192]{0}', space=vmem, size = 0x2000, scoped, tag = 'input window, operand 2']
    #allocation9 [shape = 's32[2]{0}', space=sflag, size = 0x8, scoped, tag = 'scoped memory for tpu_custom_call.1']
    #allocation10 [shape = 'u8[8192]{0}', space=vmem, size = 0x2000, scoped, tag = 'output window, operand 0']
    #allocation11 [shape = 'u8[524288]{0}', space=vmem, size = 0x80000, scoped, tag = 'output window, operand 1']
    #allocation12 [shape = 's32[2]{0}', space=sflag, size = 0x8, scoped, tag = 'scoped memory for tpu_custom_call.1']
    %14 = vsyncpa [#allocation6], 0
    %s15 = scalar_lea.sflag [#allocation6], 1
    %16 = vsyncpa %s15, 0
    %17 = vsyncpa [#allocation9], 0
    %s18 = scalar_lea.sflag [#allocation9], 1
    %19 = vsyncpa %s18, 0
    %20 = vsyncpa [#allocation7], 0
    %s21 = scalar_lea.sflag [#allocation7], 1
    %22 = vsyncpa %s21, 0
    %23 = vsyncpa [#allocation12], 0
    %s24 = scalar_lea.sflag [#allocation12], 1
    %25 = vsyncpa %s24, 0
    loop: start=0, step=1, limit=4
    $region2: #{tpu_custom_call.1} parent=1 // loop_pre_header
      _
    $region3: #{tpu_custom_call.1} parent=1 // loop_header
      %s27 = sphi 0, %s31
      %p28 = scmp.ge.s32.totalorder %s27, 4
      %s34 = sphi 0, %s46
      %s35 = sphi 0, %s42
      %s36 = sphi 0, %s34
      %s37 = sphi 0, %s35
      %s38 = sphi 0, %s36
      %s39 = sphi 0, %s37
      %s49 = sphi 0, %s51
      %s52 = sphi 0, %s49
      %s53 = sphi 0, %s52
      %s69 = sphi 0, %s53
      %s75 = sphi 0, %s77
      %s78 = sphi 0, %s75
      %s79 = sphi 0, %s78
      %s95 = sphi 0, %s79
      %s103 = sphi 0, %s105
      %s106 = sphi 0, %s103
      %s107 = sphi 0, %s106
      %s123 = sphi 0, %s107
      %s131 = sphi 0, %s133
      %s134 = sphi 0, %s131
      %s135 = sphi 0, %s134
      %s151 = sphi 0, %s135
    $region4: #{tpu_custom_call.1} parent=1 // loop_header_branch
      %30 = sbr.rel (%p28) target = $region8
    $region5: #{tpu_custom_call.1} parent=1 // loop_body
      %s32 = ssub.s32 %s27, 1
      %s33 = ssub.s32 %s27, 2
      %s40 = sadd.s32 1, %s35
      %p41 = scmp.ge.s32.totalorder %s40, 1
      %s42 = scalar_select %p41, 0, %s40
      %s43 = sadd.s32 1, %s34
      %s44 = scalar_select %p41, %s43, %s34
      %p45 = scmp.ge.s32.totalorder %s44, 2
      %s46 = scalar_select %p45, 0, %s44
      %s47 = ssub.s32 %s34, %s46
      %p48 = scmp.eq.s32.totalorder %s47, 0
      %s50 = sadd.s32 %s49, 1
      %s51 = scalar_select %p48, %s49, %s50
      %p54 = pneg %p48
      %p55 = scmp.eq.s32.totalorder %s27, 1
      %p56 = por %p54, %p55
      %p57 = scmp.ne.s32.totalorder %s49, %s52
      %p58 = scmp.eq.s32.totalorder %s27, 0
      %p59 = por %p57, %p58
      %p60 = scmp.ne.s32.totalorder %s49, %s52
      %p61 = scmp.eq.s32.totalorder %s32, 1
      %p62 = por %p60, %p61
      %p63 = scmp.ne.s32.totalorder %s52, %s53
      %p64 = scmp.eq.s32.totalorder %s32, 0
      %p65 = por %p63, %p64
      %p66 = scmp.ne.s32.totalorder %s52, %s53
      %p67 = scmp.eq.s32.totalorder %s33, 1
      %p68 = por %p66, %p67
      %p70 = scmp.ne.s32.totalorder %s53, %s69
      %p71 = scmp.eq.s32.totalorder %s33, 0
      %p72 = por %p70, %p71
      %s73 = ssub.s32 %s34, %s46
      %p74 = scmp.eq.s32.totalorder %s73, 0
      %s76 = sadd.s32 %s75, 1
      %s77 = scalar_select %p74, %s75, %s76
      %p80 = pneg %p74
      %p81 = scmp.eq.s32.totalorder %s27, 1
      %p82 = por %p80, %p81
      %p83 = scmp.ne.s32.totalorder %s75, %s78
      %p84 = scmp.eq.s32.totalorder %s27, 0
      %p85 = por %p83, %p84
      %p86 = scmp.ne.s32.totalorder %s75, %s78
      %p87 = scmp.eq.s32.totalorder %s32, 1
      %p88 = por %p86, %p87
      %p89 = scmp.ne.s32.totalorder %s78, %s79
      %p90 = scmp.eq.s32.totalorder %s32, 0
      %p91 = por %p89, %p90
      %p92 = scmp.ne.s32.totalorder %s78, %s79
      %p93 = scmp.eq.s32.totalorder %s33, 1
      %p94 = por %p92, %p93
      %p96 = scmp.ne.s32.totalorder %s79, %s95
      %p97 = scmp.eq.s32.totalorder %s33, 0
      %p98 = por %p96, %p97
      %s99 = ssub.s32 %s34, %s46
      %s100 = ssub.s32 %s35, %s42
      %s101 = sor.u32 %s99, %s100
      %p102 = scmp.eq.s32.totalorder %s101, 0
      %s104 = sadd.s32 %s103, 1
      %s105 = scalar_select %p102, %s103, %s104
      %p108 = pneg %p102
      %p109 = scmp.eq.s32.totalorder %s27, 1
      %p110 = por %p108, %p109
      %p111 = scmp.ne.s32.totalorder %s103, %s106
      %p112 = scmp.eq.s32.totalorder %s27, 0
      %p113 = por %p111, %p112
      %p114 = scmp.ne.s32.totalorder %s103, %s106
      %p115 = scmp.eq.s32.totalorder %s32, 1
      %p116 = por %p114, %p115
      %p117 = scmp.ne.s32.totalorder %s106, %s107
      %p118 = scmp.eq.s32.totalorder %s32, 0
      %p119 = por %p117, %p118
      %p120 = scmp.ne.s32.totalorder %s106, %s107
      %p121 = scmp.eq.s32.totalorder %s33, 1
      %p122 = por %p120, %p121
      %p124 = scmp.ne.s32.totalorder %s107, %s123
      %p125 = scmp.eq.s32.totalorder %s33, 0
      %p126 = por %p124, %p125
      %s127 = ssub.s32 %s34, %s46
      %s128 = ssub.s32 %s35, %s42
      %s129 = sor.u32 %s127, %s128
      %p130 = scmp.eq.s32.totalorder %s129, 0
      %s132 = sadd.s32 %s131, 1
      %s133 = scalar_select %p130, %s131, %s132
      %p136 = pneg %p130
      %p137 = scmp.eq.s32.totalorder %s27, 1
      %p138 = por %p136, %p137
      %p139 = scmp.ne.s32.totalorder %s131, %s134
      %p140 = scmp.eq.s32.totalorder %s27, 0
      %p141 = por %p139, %p140
      %p142 = scmp.ne.s32.totalorder %s131, %s134
      %p143 = scmp.eq.s32.totalorder %s32, 1
      %p144 = por %p142, %p143
      %p145 = scmp.ne.s32.totalorder %s134, %s135
      %p146 = scmp.eq.s32.totalorder %s32, 0
      %p147 = por %p145, %p146
      %p148 = scmp.ne.s32.totalorder %s134, %s135
      %p149 = scmp.eq.s32.totalorder %s33, 1
      %p150 = por %p148, %p149
      %p152 = scmp.ne.s32.totalorder %s135, %s151
      %p153 = scmp.eq.s32.totalorder %s33, 0
      %p154 = por %p152, %p153
      %p155 = scmp.le.s32.totalorder 1, %s27
      %p156 = scmp.lt.s32.totalorder %s27, 3
      %p157 = pnand %p155, %p156
      %p158 = pneg %p157
      // Predicated region
      $region9: #{tpu_custom_call.1} parent=5 // pred_check
        _
      $region10: #{tpu_custom_call.1} parent=5 // pred_check_branch
        %160 = sbr.rel (%p157) target = $region12
      $region11: #{tpu_custom_call.1} parent=5 // pred_region
        %s161 = ssub.s32 %s27, 1
      $region12: #{tpu_custom_call.1} parent=5 // pred_fallthru
        _
      %p162 = scmp.lt.s32.totalorder %s27, 2
      // Predicated region
      $region13: #{tpu_custom_call.1} parent=5 // pred_check
        %p163 = pneg %p162
      $region14: #{tpu_custom_call.1} parent=5 // pred_check_branch
        %165 = sbr.rel (%p163) target = $region16
      $region15: #{tpu_custom_call.1} parent=5 // pred_region
        // Predicated region
        $region17: #{tpu_custom_call.1} parent=15 // pred_check
          %p166 = pneg %p59
        $region18: #{tpu_custom_call.1} parent=15 // pred_check_branch
          %168 = sbr.rel (%p166) target = $region20
        $region19: #{tpu_custom_call.1} parent=15 // pred_region
          %s169 = sand.u32 %s49, 1
          %s170 = scalar_lea.sflag [#allocation6], %s169
          %s171 = sand.u32 %s49, 1
          %s172 = smul.addr %s171, 8
          %s173 = scalar_lea.vmem [#allocation5], %s172
          %s175 = ssub.s32 128, 128
          %176 = vsyncadd %s170, %s175
          %s177 = smul.addr %s34, 2
          %s178 = smul.addr %s177, 64
          %s179 = scalar_lea.hbm %s1, %s178
          %s181 = sshll.u32 %s173, 4
          %s182 = int_to_ptr.vmem [resolvable:$true] %s181
          %184 = dma.hbm_to_vmem [thread:$0]  %s179, 128, %s182, %s170
        $region20: #{tpu_custom_call.1} parent=15 // pred_fallthru
          _
        // Predicated region
        $region21: #{tpu_custom_call.1} parent=15 // pred_check
          %p185 = pneg %p85
        $region22: #{tpu_custom_call.1} parent=15 // pred_check_branch
          %187 = sbr.rel (%p185) target = $region24
        $region23: #{tpu_custom_call.1} parent=15 // pred_region
          %s188 = sand.u32 %s75, 1
          %s189 = scalar_lea.sflag [#allocation9], %s188
          %s190 = sand.u32 %s75, 1
          %s191 = smul.addr %s190, 8
          %s192 = scalar_lea.vmem [#allocation8], %s191
          %s194 = ssub.s32 128, 128
          %195 = vsyncadd %s189, %s194
          %s196 = smul.addr %s34, 2
          %s197 = smul.addr %s196, 64
          %s198 = scalar_lea.hbm %s2, %s197
          %s200 = sshll.u32 %s192, 4
          %s201 = int_to_ptr.vmem [resolvable:$true] %s200
          %203 = dma.hbm_to_vmem [thread:$0]  %s198, 128, %s201, %s189
        $region24: #{tpu_custom_call.1} parent=15 // pred_fallthru
          _
      $region16: #{tpu_custom_call.1} parent=5 // pred_fallthru
        _
      %p204 = scmp.le.s32.totalorder 1, %s27
      %p205 = scmp.lt.s32.totalorder %s27, 3
      %p206 = pnand %p204, %p205
      %p207 = pneg %p206
      // Predicated region
      $region25: #{tpu_custom_call.1} parent=5 // pred_check
        _
      $region26: #{tpu_custom_call.1} parent=5 // pred_check_branch
        %209 = sbr.rel (%p206) target = $region28
      $region27: #{tpu_custom_call.1} parent=5 // pred_region
        %s210 = ssub.s32 %s27, 1
        %s211 = sand.u32 %s52, 1
        %s212 = scalar_lea.sflag [#allocation6], %s211
        %s213 = sand.u32 %s52, 1
        %s214 = smul.addr %s213, 8
        %s215 = scalar_lea.vmem [#allocation5], %s214
        // Predicated region
        $region29: #{tpu_custom_call.1} parent=27 // pred_check
          %p216 = pneg %p65
        $region30: #{tpu_custom_call.1} parent=27 // pred_check_branch
          %218 = sbr.rel (%p216) target = $region32
        $region31: #{tpu_custom_call.1} parent=27 // pred_region
          %219 = dma.done %s212, 128
        $region32: #{tpu_custom_call.1} parent=27 // pred_fallthru
          _
        %s220 = sand.u32 %s78, 1
        %s221 = scalar_lea.sflag [#allocation9], %s220
        %s222 = sand.u32 %s78, 1
        %s223 = smul.addr %s222, 8
        %s224 = scalar_lea.vmem [#allocation8], %s223
        // Predicated region
        $region33: #{tpu_custom_call.1} parent=27 // pred_check
          %p225 = pneg %p91
        $region34: #{tpu_custom_call.1} parent=27 // pred_check_branch
          %227 = sbr.rel (%p225) target = $region36
        $region35: #{tpu_custom_call.1} parent=27 // pred_region
          %228 = dma.done %s221, 128
        $region36: #{tpu_custom_call.1} parent=27 // pred_fallthru
          _
        %s229 = sand.u32 %s52, 1
        %s230 = scalar_lea.sflag [#allocation6], %s229
        %s231 = sand.u32 %s52, 1
        %s232 = smul.addr %s231, 8
        %s233 = scalar_lea.vmem [#allocation5], %s232
        %p234 = pneg %p65
        %p235 = pneg %p62
        %s236 = sand.u32 %s78, 1
        %s237 = scalar_lea.sflag [#allocation9], %s236
        %s238 = sand.u32 %s78, 1
        %s239 = smul.addr %s238, 8
        %s240 = scalar_lea.vmem [#allocation8], %s239
        %p241 = pneg %p91
        %p242 = pneg %p88
        %p243 = pneg %p119
        %p244 = pneg %p116
        %s245 = sand.u32 %s106, 1
        %s246 = scalar_lea.sflag [#allocation7], %s245
        %s247 = sand.u32 %s106, 1
        %s248 = smul.addr %s247, 8
        %s249 = scalar_lea.vmem [#allocation10], %s248
        %p250 = pneg %p147
        %p251 = pneg %p144
        %s252 = sand.u32 %s134, 1
        %s253 = scalar_lea.sflag [#allocation12], %s252
        %s254 = sand.u32 %s134, 1
        %s255 = smul.addr %s254, 512
        %s256 = scalar_lea.vmem [#allocation11], %s255
        %s257 = smul.u32 2, %s37
        %s258 = smul.u32 32, %s37
        %s259 = sld [smem:[#allocation4]]
        %s260 = sld [smem:[#allocation4 + $0x1]]
        %s261 = sld [smem:[#allocation4 + $0x2]]
        %p262 = scmp.eq.s32.totalorder %s37, 0
        // Predicated region
        $region37: #{tpu_custom_call.1} parent=27 // pred_check
          %p263 = pneg %p262
        $region38: #{tpu_custom_call.1} parent=27 // pred_check_branch
          %265 = sbr.rel (%p263) target = $region40
        $region39: #{tpu_custom_call.1} parent=27 // pred_region
          %v266 = vld [vmem:[%s215] sm:$0xff]
          %v267 = vmul.f32 %v266, %v266
          %v269 = vcombine.high %v267, %v267
          %vm271 = vcmask 1043456
          %v272 = vsel %vm271, %v267, 0.0
          %v273 = vrot.slane %v272, 4
          %v274 = vadd.f32 %v272, %v273
          %v275 = vrot.slane %v274, 2
          %v276 = vadd.f32 %v274, %v275
          %v277 = vrot.slane %v276, 1
          %v278 = vadd.f32 %v276, %v277
          %v279 = vsel %vm271, %v269, 0.0
          %v280 = vrot.slane %v279, 4
          %v281 = vadd.f32 %v279, %v280
          %v282 = vrot.slane %v281, 2
          %v283 = vadd.f32 %v281, %v282
          %v284 = vrot.slane %v283, 1
          %v285 = vadd.f32 %v283, %v284
          %v286 = vadd.f32 %v278, 1e-06
          %v287 = vadd.f32 %v285, 1e-06
          %v288 = vrsqrt.pop %v286
          %v289 = vrsqrt.pop %v287
          %v292 = vcombine.low %v288, %v289
          %v294 = vmul.f32 %v266, %v292
          %295 = vst [vmem:[#allocation2] sm:$0xff] %v294
        $region40: #{tpu_custom_call.1} parent=27 // pred_fallthru
          _
        %s296 = smul.u32 %s37, 256
        %v297 = vld [vmem:[#allocation2] sm:$0xff]
        %s298 = sshra.s32 %s296, 7
        %s299 = sand.u32 %s296, 127
        %s300 = smul.addr %s298, 4
        %s301 = scalar_lea.vmem [#allocation2], %s300
        %v302 = vld [vmem:[%s301] sm:$0xff]
        %v303 = vstv %s259
        %v304 = vmul.f32 %v302, %v303
        %v306 = vcombine.high %v304, %v304
        %308 = vxpose.xlu0.b32.start [1/16] %v304, 128
        %309 = vxpose.xlu0.b32.cont [2/16] 0.0, 128
        %310 = vxpose.xlu0.b32.cont [3/16] 0.0, 128
        %311 = vxpose.xlu0.b32.cont [4/16] 0.0, 128
        %312 = vxpose.xlu0.b32.cont [5/16] 0.0, 128
        %313 = vxpose.xlu0.b32.cont [6/16] 0.0, 128
        %314 = vxpose.xlu0.b32.cont [7/16] 0.0, 128
        %315 = vxpose.xlu0.b32.cont [8/16] 0.0, 128
        %316 = vxpose.xlu0.b32.cont [9/16] 0.0, 128
        %317 = vxpose.xlu0.b32.cont [10/16] 0.0, 128
        %318 = vxpose.xlu0.b32.cont [11/16] 0.0, 128
        %319 = vxpose.xlu0.b32.cont [12/16] 0.0, 128
        %320 = vxpose.xlu0.b32.cont [13/16] 0.0, 128
        %321 = vxpose.xlu0.b32.cont [14/16] 0.0, 128
        %322 = vxpose.xlu0.b32.cont [15/16] 0.0, 128
        %323 = vxpose.xlu0.b32.end [16/16] 0.0, 128
        %v324 = vpop.trf.xlu0
        %v325 = vpop.trf.xlu0
        %v326 = vpop.trf.xlu0
        %v327 = vpop.trf.xlu0
        %v328 = vpop.trf.xlu0
        %v329 = vpop.trf.xlu0
        %v330 = vpop.trf.xlu0
        %v331 = vpop.trf.xlu0
        %v332 = vpop.trf.xlu0
        %v333 = vpop.trf.xlu0
        %v334 = vpop.trf.xlu0
        %v335 = vpop.trf.xlu0
        %v336 = vpop.trf.xlu0
        %v337 = vpop.trf.xlu0
        %v338 = vpop.trf.xlu0
        %v339 = vpop.trf.xlu0
        %340 = vxpose.xlu0.b32.start [1/16] %v306, 128
        %341 = vxpose.xlu0.b32.cont [2/16] 0.0, 128
        %342 = vxpose.xlu0.b32.cont [3/16] 0.0, 128
        %343 = vxpose.xlu0.b32.cont [4/16] 0.0, 128
        %344 = vxpose.xlu0.b32.cont [5/16] 0.0, 128
        %345 = vxpose.xlu0.b32.cont [6/16] 0.0, 128
        %346 = vxpose.xlu0.b32.cont [7/16] 0.0, 128
        %347 = vxpose.xlu0.b32.cont [8/16] 0.0, 128
        %348 = vxpose.xlu0.b32.cont [9/16] 0.0, 128
        %349 = vxpose.xlu0.b32.cont [10/16] 0.0, 128
        %350 = vxpose.xlu0.b32.cont [11/16] 0.0, 128
        %351 = vxpose.xlu0.b32.cont [12/16] 0.0, 128
        %352 = vxpose.xlu0.b32.cont [13/16] 0.0, 128
        %353 = vxpose.xlu0.b32.cont [14/16] 0.0, 128
        %354 = vxpose.xlu0.b32.cont [15/16] 0.0, 128
        %355 = vxpose.xlu0.b32.end [16/16] 0.0, 128
        %v356 = vpop.trf.xlu0
        %v357 = vpop.trf.xlu0
        %v358 = vpop.trf.xlu0
        %v359 = vpop.trf.xlu0
        %v360 = vpop.trf.xlu0
        %v361 = vpop.trf.xlu0
        %v362 = vpop.trf.xlu0
        %v363 = vpop.trf.xlu0
        %v364 = vpop.trf.xlu0
        %v365 = vpop.trf.xlu0
        %v366 = vpop.trf.xlu0
        %v367 = vpop.trf.xlu0
        %v368 = vpop.trf.xlu0
        %v369 = vpop.trf.xlu0
        %v370 = vpop.trf.xlu0
        %v371 = vpop.trf.xlu0
        %v373 = vcombine.high %v297, %v297
        %vm374 = vcmask 31744
        %v376 = vsel %vm374, %v324, 0
        %v379 = vsel %vm374, %v325, 0
        %v382 = vsel %vm374, %v326, 0
        %v385 = vsel %vm374, %v327, 0
        %v388 = vsel %vm374, %v328, 0
        %v391 = vsel %vm374, %v329, 0
        %v394 = vsel %vm374, %v330, 0
        %v397 = vsel %vm374, %v331, 0
        %v400 = vsel %vm374, %v332, 0
        %v403 = vsel %vm374, %v333, 0
        %v406 = vsel %vm374, %v334, 0
        %v409 = vsel %vm374, %v335, 0
        %v412 = vsel %vm374, %v336, 0
        %v415 = vsel %vm374, %v337, 0
        %v418 = vsel %vm374, %v338, 0
        %v421 = vsel %vm374, %v339, 0
        %v424 = vsel %vm374, %v356, 0
        %v427 = vsel %vm374, %v357, 0
        %v430 = vsel %vm374, %v358, 0
        %v433 = vsel %vm374, %v359, 0
        %v436 = vsel %vm374, %v360, 0
        %v439 = vsel %vm374, %v361, 0
        %v442 = vsel %vm374, %v362, 0
        %v445 = vsel %vm374, %v363, 0
        %v448 = vsel %vm374, %v364, 0
        %v451 = vsel %vm374, %v365, 0
        %v454 = vsel %vm374, %v366, 0
        %v457 = vsel %vm374, %v367, 0
        %v460 = vsel %vm374, %v368, 0
        %v463 = vsel %vm374, %v369, 0
        %v466 = vsel %vm374, %v370, 0
        %v469 = vsel %vm374, %v371, 0
        %vm471 = vcmask 1043456
        %v472 = vsel %vm471, %v297, 0
        %v474 = vsel %vm471, %v373, 0
        %476 = vmatprep.subr.mxu0 %v474
        %477 = vmatpush1.msra.mxu0 %v472
        %478 = vmatprep.subr.mxu0 0.0
        %479 = vmatpush1.msra.mxu0 0.0
        %480 = vmatprep.subr.mxu0 0.0
        %481 = vmatpush1.msra.mxu0 0.0
        %482 = vmatprep.subr.mxu0 0.0
        %483 = vmatpush1.msra.mxu0 0.0
        %484 = vmatprep.subr.mxu0 0.0
        %485 = vmatpush1.msra.mxu0 0.0
        %486 = vmatprep.subr.mxu0 0.0
        %487 = vmatpush1.msra.mxu0 0.0
        %488 = vmatprep.subr.mxu0 0.0
        %489 = vmatpush1.msra.mxu0 0.0
        %490 = vmatprep.subr.mxu0 0.0
        %491 = vmatpush1.msra.mxu0 0.0
        %492 = vmatprep.subr.mxu0 0.0
        %493 = vmatpush1.msra.mxu0 0.0
        %494 = vmatprep.subr.mxu0 0.0
        %495 = vmatpush1.msra.mxu0 0.0
        %496 = vmatprep.subr.mxu0 0.0
        %497 = vmatpush1.msra.mxu0 0.0
        %498 = vmatprep.subr.mxu0 0.0
        %499 = vmatpush1.msra.mxu0 0.0
        %500 = vmatprep.subr.mxu0 0.0
        %501 = vmatpush1.msra.mxu0 0.0
        %502 = vmatprep.subr.mxu0 0.0
        %503 = vmatpush1.msra.mxu0 0.0
        %504 = vmatprep.subr.mxu0 0.0
        %505 = vmatpush1.msra.mxu0 0.0
        %506 = vmatprep.subr.mxu0 0.0
        %507 = vmatpush1.msra.mxu0 0.0
        %508 = vmatprep.subr.mxu0 0.0
        %509 = vmatpush1.msra.mxu0 0.0
        %510 = vmatprep.subr.mxu0 0.0
        %511 = vmatpush1.msra.mxu0 0.0
        %512 = vmatprep.subr.mxu0 0.0
        %513 = vmatpush1.msra.mxu0 0.0
        %514 = vmatprep.subr.mxu0 0.0
        %515 = vmatpush1.msra.mxu0 0.0
        %516 = vmatprep.subr.mxu0 0.0
        %517 = vmatpush1.msra.mxu0 0.0
        %518 = vmatprep.subr.mxu0 0.0
        %519 = vmatpush1.msra.mxu0 0.0
        %520 = vmatprep.subr.mxu0 0.0
        %521 = vmatpush1.msra.mxu0 0.0
        %522 = vmatprep.subr.mxu0 0.0
        %523 = vmatpush1.msra.mxu0 0.0
        %524 = vmatprep.subr.mxu0 0.0
        %525 = vmatpush1.msra.mxu0 0.0
        %526 = vmatprep.subr.mxu0 0.0
        %527 = vmatpush1.msra.mxu0 0.0
        %528 = vmatprep.subr.mxu0 0.0
        %529 = vmatpush1.msra.mxu0 0.0
        %530 = vmatprep.subr.mxu0 0.0
        %531 = vmatpush1.msra.mxu0 0.0
        %532 = vmatprep.subr.mxu0 0.0
        %533 = vmatpush1.msra.mxu0 0.0
        %534 = vmatprep.subr.mxu0 0.0
        %535 = vmatpush1.msra.mxu0 0.0
        %536 = vmatprep.subr.mxu0 0.0
        %537 = vmatpush1.msra.mxu0 0.0
        %538 = vmatprep.subr.mxu0 0.0
        %539 = vmatpush1.msra.mxu0 0.0
        %540 = vmatprep.mubr.f32.mxu0 0.0
        %541 = vmatmul.mubr.f32.gmra.mrb[0].mxu0 %v376
        %v542 = vpop.f32.mrb[0].mxu0
        %v543 = vadd.f32 0.0, %v542
        %v544 = vpop.f32.mrb[0].mxu0
        %v545 = vadd.f32 0.0, %v544
        %546 = vmatprep.mubr.f32.mxu0 0.0
        %547 = vmatmul.mubr.f32.gmra.mrb[0].mxu0 %v379
        %v548 = vpop.f32.mrb[0].mxu0
        %v549 = vadd.f32 0.0, %v548
        %v550 = vpop.f32.mrb[0].mxu0
        %v551 = vadd.f32 0.0, %v550
        %552 = vmatprep.mubr.f32.mxu0 0.0
        %553 = vmatmul.mubr.f32.gmra.mrb[0].mxu0 %v382
        %v554 = vpop.f32.mrb[0].mxu0
        %v555 = vadd.f32 0.0, %v554
        %v556 = vpop.f32.mrb[0].mxu0
        %v557 = vadd.f32 0.0, %v556
        %558 = vmatprep.mubr.f32.mxu0 0.0
        %559 = vmatmul.mubr.f32.gmra.mrb[0].mxu0 %v385
        %v560 = vpop.f32.mrb[0].mxu0
        %v561 = vadd.f32 0.0, %v560
        %v562 = vpop.f32.mrb[0].mxu0
        %v563 = vadd.f32 0.0, %v562
        %564 = vmatprep.mubr.f32.mxu0 0.0
        %565 = vmatmul.mubr.f32.gmra.mrb[0].mxu0 %v388
        %v566 = vpop.f32.mrb[0].mxu0
        %v567 = vadd.f32 0.0, %v566
        %v568 = vpop.f32.mrb[0].mxu0
        %v569 = vadd.f32 0.0, %v568
        %570 = vmatprep.mubr.f32.mxu0 0.0
        %571 = vmatmul.mubr.f32.gmra.mrb[0].mxu0 %v391
        %v572 = vpop.f32.mrb[0].mxu0
        %v573 = vadd.f32 0.0, %v572
        %v574 = vpop.f32.mrb[0].mxu0
        %v575 = vadd.f32 0.0, %v574
        %576 = vmatprep.mubr.f32.mxu0 0.0
        %577 = vmatmul.mubr.f32.gmra.mrb[0].mxu0 %v394
        %v578 = vpop.f32.mrb[0].mxu0
        %v579 = vadd.f32 0.0, %v578
        %v580 = vpop.f32.mrb[0].mxu0
        %v581 = vadd.f32 0.0, %v580
        %582 = vmatprep.mubr.f32.mxu0 0.0
        %583 = vmatmul.mubr.f32.gmra.mrb[0].mxu0 %v397
        %v584 = vpop.f32.mrb[0].mxu0
        %v585 = vadd.f32 0.0, %v584
        %v586 = vpop.f32.mrb[0].mxu0
        %v587 = vadd.f32 0.0, %v586
        %588 = vmatprep.mubr.f32.mxu0 0.0
        %589 = vmatmul.mubr.f32.gmra.mrb[0].mxu0 %v400
        %v590 = vpop.f32.mrb[0].mxu0
        %v591 = vadd.f32 0.0, %v590
        %v592 = vpop.f32.mrb[0].mxu0
        %v593 = vadd.f32 0.0, %v592
        %594 = vmatprep.mubr.f32.mxu0 0.0
        %595 = vmatmul.mubr.f32.gmra.mrb[0].mxu0 %v403
        %v596 = vpop.f32.mrb[0].mxu0
        %v597 = vadd.f32 0.0, %v596
        %v598 = vpop.f32.mrb[0].mxu0
        %v599 = vadd.f32 0.0, %v598
        %600 = vmatprep.mubr.f32.mxu0 0.0
        %601 = vmatmul.mubr.f32.gmra.mrb[0].mxu0 %v406
        %v602 = vpop.f32.mrb[0].mxu0
        %v603 = vadd.f32 0.0, %v602
        %v604 = vpop.f32.mrb[0].mxu0
        %v605 = vadd.f32 0.0, %v604
        %606 = vmatprep.mubr.f32.mxu0 0.0
        %607 = vmatmul.mubr.f32.gmra.mrb[0].mxu0 %v409
        %v608 = vpop.f32.mrb[0].mxu0
        %v609 = vadd.f32 0.0, %v608
        %v610 = vpop.f32.mrb[0].mxu0
        %v611 = vadd.f32 0.0, %v610
        %612 = vmatprep.mubr.f32.mxu0 0.0
        %613 = vmatmul.mubr.f32.gmra.mrb[0].mxu0 %v412
        %v614 = vpop.f32.mrb[0].mxu0
        %v615 = vadd.f32 0.0, %v614
        %v616 = vpop.f32.mrb[0].mxu0
        %v617 = vadd.f32 0.0, %v616
        %618 = vmatprep.mubr.f32.mxu0 0.0
        %619 = vmatmul.mubr.f32.gmra.mrb[0].mxu0 %v415
        %v620 = vpop.f32.mrb[0].mxu0
        %v621 = vadd.f32 0.0, %v620
        %v622 = vpop.f32.mrb[0].mxu0
        %v623 = vadd.f32 0.0, %v622
        %624 = vmatprep.mubr.f32.mxu0 0.0
        %625 = vmatmul.mubr.f32.gmra.mrb[0].mxu0 %v418
        %v626 = vpop.f32.mrb[0].mxu0
        %v627 = vadd.f32 0.0, %v626
        %v628 = vpop.f32.mrb[0].mxu0
        %v629 = vadd.f32 0.0, %v628
        %630 = vmatprep.mubr.f32.mxu0 0.0
        %631 = vmatmul.mubr.f32.gmra.mrb[0].mxu0 %v421
        %v632 = vpop.f32.mrb[0].mxu0
        %v633 = vadd.f32 0.0, %v632
        %v634 = vpop.f32.mrb[0].mxu0
        %v635 = vadd.f32 0.0, %v634
        %636 = vmatprep.mubr.f32.mxu0 0.0
        %637 = vmatmul.mubr.f32.gmra.mrb[0].mxu0 %v424
        %v638 = vpop.f32.mrb[0].mxu0
        %v639 = vadd.f32 0.0, %v638
        %v640 = vpop.f32.mrb[0].mxu0
        %v641 = vadd.f32 0.0, %v640
        %642 = vmatprep.mubr.f32.mxu0 0.0
        %643 = vmatmul.mubr.f32.gmra.mrb[0].mxu0 %v427
        %v644 = vpop.f32.mrb[0].mxu0
        %v645 = vadd.f32 0.0, %v644
        %v646 = vpop.f32.mrb[0].mxu0
        %v647 = vadd.f32 0.0, %v646
        %648 = vmatprep.mubr.f32.mxu0 0.0
        %649 = vmatmul.mubr.f32.gmra.mrb[0].mxu0 %v430
        %v650 = vpop.f32.mrb[0].mxu0
        %v651 = vadd.f32 0.0, %v650
        %v652 = vpop.f32.mrb[0].mxu0
        %v653 = vadd.f32 0.0, %v652
        %654 = vmatprep.mubr.f32.mxu0 0.0
        %655 = vmatmul.mubr.f32.gmra.mrb[0].mxu0 %v433
        %v656 = vpop.f32.mrb[0].mxu0
        %v657 = vadd.f32 0.0, %v656
        %v658 = vpop.f32.mrb[0].mxu0
        %v659 = vadd.f32 0.0, %v658
        %660 = vmatprep.mubr.f32.mxu0 0.0
        %661 = vmatmul.mubr.f32.gmra.mrb[0].mxu0 %v436
        %v662 = vpop.f32.mrb[0].mxu0
        %v663 = vadd.f32 0.0, %v662
        %v664 = vpop.f32.mrb[0].mxu0
        %v665 = vadd.f32 0.0, %v664
        %666 = vmatprep.mubr.f32.mxu0 0.0
        %667 = vmatmul.mubr.f32.gmra.mrb[0].mxu0 %v439
        %v668 = vpop.f32.mrb[0].mxu0
        %v669 = vadd.f32 0.0, %v668
        %v670 = vpop.f32.mrb[0].mxu0
        %v671 = vadd.f32 0.0, %v670
        %672 = vmatprep.mubr.f32.mxu0 0.0
        %673 = vmatmul.mubr.f32.gmra.mrb[0].mxu0 %v442
        %v674 = vpop.f32.mrb[0].mxu0
        %v675 = vadd.f32 0.0, %v674
        %v676 = vpop.f32.mrb[0].mxu0
        %v677 = vadd.f32 0.0, %v676
        %678 = vmatprep.mubr.f32.mxu0 0.0
        %679 = vmatmul.mubr.f32.gmra.mrb[0].mxu0 %v445
        %v680 = vpop.f32.mrb[0].mxu0
        %v681 = vadd.f32 0.0, %v680
        %v682 = vpop.f32.mrb[0].mxu0
        %v683 = vadd.f32 0.0, %v682
        %684 = vmatprep.mubr.f32.mxu0 0.0
        %685 = vmatmul.mubr.f32.gmra.mrb[0].mxu0 %v448
        %v686 = vpop.f32.mrb[0].mxu0
        %v687 = vadd.f32 0.0, %v686
        %v688 = vpop.f32.mrb[0].mxu0
        %v689 = vadd.f32 0.0, %v688
        %690 = vmatprep.mubr.f32.mxu0 0.0
        %691 = vmatmul.mubr.f32.gmra.mrb[0].mxu0 %v451
        %v692 = vpop.f32.mrb[0].mxu0
        %v693 = vadd.f32 0.0, %v692
        %v694 = vpop.f32.mrb[0].mxu0
        %v695 = vadd.f32 0.0, %v694
        %696 = vmatprep.mubr.f32.mxu0 0.0
        %697 = vmatmul.mubr.f32.gmra.mrb[0].mxu0 %v454
        %v698 = vpop.f32.mrb[0].mxu0
        %v699 = vadd.f32 0.0, %v698
        %v700 = vpop.f32.mrb[0].mxu0
        %v701 = vadd.f32 0.0, %v700
        %702 = vmatprep.mubr.f32.mxu0 0.0
        %703 = vmatmul.mubr.f32.gmra.mrb[0].mxu0 %v457
        %v704 = vpop.f32.mrb[0].mxu0
        %v705 = vadd.f32 0.0, %v704
        %v706 = vpop.f32.mrb[0].mxu0
        %v707 = vadd.f32 0.0, %v706
        %708 = vmatprep.mubr.f32.mxu0 0.0
        %709 = vmatmul.mubr.f32.gmra.mrb[0].mxu0 %v460
        %v710 = vpop.f32.mrb[0].mxu0
        %v711 = vadd.f32 0.0, %v710
        %v712 = vpop.f32.mrb[0].mxu0
        %v713 = vadd.f32 0.0, %v712
        %714 = vmatprep.mubr.f32.mxu0 0.0
        %715 = vmatmul.mubr.f32.gmra.mrb[0].mxu0 %v463
        %v716 = vpop.f32.mrb[0].mxu0
        %v717 = vadd.f32 0.0, %v716
        %v718 = vpop.f32.mrb[0].mxu0
        %v719 = vadd.f32 0.0, %v718
        %720 = vmatprep.mubr.f32.mxu0 0.0
        %721 = vmatmul.mubr.f32.gmra.mrb[0].mxu0 %v466
        %v722 = vpop.f32.mrb[0].mxu0
        %v723 = vadd.f32 0.0, %v722
        %v724 = vpop.f32.mrb[0].mxu0
        %v725 = vadd.f32 0.0, %v724
        %726 = vmatprep.mubr.f32.mxu0 0.0
        %727 = vmatmul.mubr.f32.gmra.mrb[0].mxu0 %v469
        %v728 = vpop.f32.mrb[0].mxu0
        %v729 = vadd.f32 0.0, %v728
        %v730 = vpop.f32.mrb[0].mxu0
        %v731 = vadd.f32 0.0, %v730
        %732 = vdwg.mxu0
        %v733 = vmax.f32 %v543, %v545
        %734 = vmax.xlane.f32.xlu0 %v733
        %v735 = vpop.xlane.xlu0 %734
        %v736 = vmax.f32 %v549, %v551
        %737 = vmax.xlane.f32.xlu0 %v736
        %v738 = vpop.xlane.xlu0 %737
        %v739 = vmax.f32 %v555, %v557
        %740 = vmax.xlane.f32.xlu0 %v739
        %v741 = vpop.xlane.xlu0 %740
        %v742 = vmax.f32 %v561, %v563
        %743 = vmax.xlane.f32.xlu0 %v742
        %v744 = vpop.xlane.xlu0 %743
        %v745 = vmax.f32 %v567, %v569
        %746 = vmax.xlane.f32.xlu0 %v745
        %v747 = vpop.xlane.xlu0 %746
        %v748 = vmax.f32 %v573, %v575
        %749 = vmax.xlane.f32.xlu0 %v748
        %v750 = vpop.xlane.xlu0 %749
        %v751 = vmax.f32 %v579, %v581
        %752 = vmax.xlane.f32.xlu0 %v751
        %v753 = vpop.xlane.xlu0 %752
        %v754 = vmax.f32 %v585, %v587
        %755 = vmax.xlane.f32.xlu0 %v754
        %v756 = vpop.xlane.xlu0 %755
        %v757 = vmax.f32 %v591, %v593
        %758 = vmax.xlane.f32.xlu0 %v757
        %v759 = vpop.xlane.xlu0 %758
        %v760 = vmax.f32 %v597, %v599
        %761 = vmax.xlane.f32.xlu0 %v760
        %v762 = vpop.xlane.xlu0 %761
        %v763 = vmax.f32 %v603, %v605
        %764 = vmax.xlane.f32.xlu0 %v763
        %v765 = vpop.xlane.xlu0 %764
        %v766 = vmax.f32 %v609, %v611
        %767 = vmax.xlane.f32.xlu0 %v766
        %v768 = vpop.xlane.xlu0 %767
        %v769 = vmax.f32 %v615, %v617
        %770 = vmax.xlane.f32.xlu0 %v769
        %v771 = vpop.xlane.xlu0 %770
        %v772 = vmax.f32 %v621, %v623
        %773 = vmax.xlane.f32.xlu0 %v772
        %v774 = vpop.xlane.xlu0 %773
        %v775 = vmax.f32 %v627, %v629
        %776 = vmax.xlane.f32.xlu0 %v775
        %v777 = vpop.xlane.xlu0 %776
        %v778 = vmax.f32 %v633, %v635
        %779 = vmax.xlane.f32.xlu0 %v778
        %v780 = vpop.xlane.xlu0 %779
        %v781 = vmax.f32 %v639, %v641
        %782 = vmax.xlane.f32.xlu0 %v781
        %v783 = vpop.xlane.xlu0 %782
        %v784 = vmax.f32 %v645, %v647
        %785 = vmax.xlane.f32.xlu0 %v784
        %v786 = vpop.xlane.xlu0 %785
        %v787 = vmax.f32 %v651, %v653
        %788 = vmax.xlane.f32.xlu0 %v787
        %v789 = vpop.xlane.xlu0 %788
        %v790 = vmax.f32 %v657, %v659
        %791 = vmax.xlane.f32.xlu0 %v790
        %v792 = vpop.xlane.xlu0 %791
        %v793 = vmax.f32 %v663, %v665
        %794 = vmax.xlane.f32.xlu0 %v793
        %v795 = vpop.xlane.xlu0 %794
        %v796 = vmax.f32 %v669, %v671
        %797 = vmax.xlane.f32.xlu0 %v796
        %v798 = vpop.xlane.xlu0 %797
        %v799 = vmax.f32 %v675, %v677
        %800 = vmax.xlane.f32.xlu0 %v799
        %v801 = vpop.xlane.xlu0 %800
        %v802 = vmax.f32 %v681, %v683
        %803 = vmax.xlane.f32.xlu0 %v802
        %v804 = vpop.xlane.xlu0 %803
        %v805 = vmax.f32 %v687, %v689
        %806 = vmax.xlane.f32.xlu0 %v805
        %v807 = vpop.xlane.xlu0 %806
        %v808 = vmax.f32 %v693, %v695
        %809 = vmax.xlane.f32.xlu0 %v808
        %v810 = vpop.xlane.xlu0 %809
        %v811 = vmax.f32 %v699, %v701
        %812 = vmax.xlane.f32.xlu0 %v811
        %v813 = vpop.xlane.xlu0 %812
        %v814 = vmax.f32 %v705, %v707
        %815 = vmax.xlane.f32.xlu0 %v814
        %v816 = vpop.xlane.xlu0 %815
        %v817 = vmax.f32 %v711, %v713
        %818 = vmax.xlane.f32.xlu0 %v817
        %v819 = vpop.xlane.xlu0 %818
        %v820 = vmax.f32 %v717, %v719
        %821 = vmax.xlane.f32.xlu0 %v820
        %v822 = vpop.xlane.xlu0 %821
        %v823 = vmax.f32 %v723, %v725
        %824 = vmax.xlane.f32.xlu0 %v823
        %v825 = vpop.xlane.xlu0 %824
        %v826 = vmax.f32 %v729, %v731
        %827 = vmax.xlane.f32.xlu0 %v826
        %v828 = vpop.xlane.xlu0 %827
        %v829 = vsub.f32 %v543, %v735
        %v830 = vsub.f32 %v545, %v735
        %v831 = vsub.f32 %v549, %v738
        %v832 = vsub.f32 %v551, %v738
        %v833 = vsub.f32 %v555, %v741
        %v834 = vsub.f32 %v557, %v741
        %v835 = vsub.f32 %v561, %v744
        %v836 = vsub.f32 %v563, %v744
        %v837 = vsub.f32 %v567, %v747
        %v838 = vsub.f32 %v569, %v747
        %v839 = vsub.f32 %v573, %v750
        %v840 = vsub.f32 %v575, %v750
        %v841 = vsub.f32 %v579, %v753
        %v842 = vsub.f32 %v581, %v753
        %v843 = vsub.f32 %v585, %v756
        %v844 = vsub.f32 %v587, %v756
        %v845 = vsub.f32 %v591, %v759
        %v846 = vsub.f32 %v593, %v759
        %v847 = vsub.f32 %v597, %v762
        %v848 = vsub.f32 %v599, %v762
        %v849 = vsub.f32 %v603, %v765
        %v850 = vsub.f32 %v605, %v765
        %v851 = vsub.f32 %v609, %v768
        %v852 = vsub.f32 %v611, %v768
        %v853 = vsub.f32 %v615, %v771
        %v854 = vsub.f32 %v617, %v771
        %v855 = vsub.f32 %v621, %v774
        %v856 = vsub.f32 %v623, %v774
        %v857 = vsub.f32 %v627, %v777
        %v858 = vsub.f32 %v629, %v777
        %v859 = vsub.f32 %v633, %v780
        %v860 = vsub.f32 %v635, %v780
        %v861 = vsub.f32 %v639, %v783
        %v862 = vsub.f32 %v641, %v783
        %v863 = vsub.f32 %v645, %v786
        %v864 = vsub.f32 %v647, %v786
        %v865 = vsub.f32 %v651, %v789
        %v866 = vsub.f32 %v653, %v789
        %v867 = vsub.f32 %v657, %v792
        %v868 = vsub.f32 %v659, %v792
        %v869 = vsub.f32 %v663, %v795
        %v870 = vsub.f32 %v665, %v795
        %v871 = vsub.f32 %v669, %v798
        %v872 = vsub.f32 %v671, %v798
        %v873 = vsub.f32 %v675, %v801
        %v874 = vsub.f32 %v677, %v801
        %v875 = vsub.f32 %v681, %v804
        %v876 = vsub.f32 %v683, %v804
        %v877 = vsub.f32 %v687, %v807
        %v878 = vsub.f32 %v689, %v807
        %v879 = vsub.f32 %v693, %v810
        %v880 = vsub.f32 %v695, %v810
        %v881 = vsub.f32 %v699, %v813
        %v882 = vsub.f32 %v701, %v813
        %v883 = vsub.f32 %v705, %v816
        %v884 = vsub.f32 %v707, %v816
        %v885 = vsub.f32 %v711, %v819
        %v886 = vsub.f32 %v713, %v819
        %v887 = vsub.f32 %v717, %v822
        %v888 = vsub.f32 %v719, %v822
        %v889 = vsub.f32 %v723, %v825
        %v890 = vsub.f32 %v725, %v825
        %v891 = vsub.f32 %v729, %v828
        %v892 = vsub.f32 %v731, %v828
        %v893 = vmul.f32 %v829, 1.442695
        %v894 = vpow.pop %v893
        %v895 = vmul.f32 %v830, 1.442695
        %v896 = vpow.pop %v895
        %v897 = vmul.f32 %v831, 1.442695
        %v898 = vpow.pop %v897
        %v899 = vmul.f32 %v832, 1.442695
        %v900 = vpow.pop %v899
        %v901 = vmul.f32 %v833, 1.442695
        %v902 = vpow.pop %v901
        %v903 = vmul.f32 %v834, 1.442695
        %v904 = vpow.pop %v903
        %v905 = vmul.f32 %v835, 1.442695
        %v906 = vpow.pop %v905
        %v907 = vmul.f32 %v836, 1.442695
        %v908 = vpow.pop %v907
        %v909 = vmul.f32 %v837, 1.442695
        %v910 = vpow.pop %v909
        %v911 = vmul.f32 %v838, 1.442695
        %v912 = vpow.pop %v911
        %v913 = vmul.f32 %v839, 1.442695
        %v914 = vpow.pop %v913
        %v915 = vmul.f32 %v840, 1.442695
        %v916 = vpow.pop %v915
        %v917 = vmul.f32 %v841, 1.442695
        %v918 = vpow.pop %v917
        %v919 = vmul.f32 %v842, 1.442695
        %v920 = vpow.pop %v919
        %v921 = vmul.f32 %v843, 1.442695
        %v922 = vpow.pop %v921
        %v923 = vmul.f32 %v844, 1.442695
        %v924 = vpow.pop %v923
        %v925 = vmul.f32 %v845, 1.442695
        %v926 = vpow.pop %v925
        %v927 = vmul.f32 %v846, 1.442695
        %v928 = vpow.pop %v927
        %v929 = vmul.f32 %v847, 1.442695
        %v930 = vpow.pop %v929
        %v931 = vmul.f32 %v848, 1.442695
        %v932 = vpow.pop %v931
        %v933 = vmul.f32 %v849, 1.442695
        %v934 = vpow.pop %v933
        %v935 = vmul.f32 %v850, 1.442695
        %v936 = vpow.pop %v935
        %v937 = vmul.f32 %v851, 1.442695
        %v938 = vpow.pop %v937
        %v939 = vmul.f32 %v852, 1.442695
        %v940 = vpow.pop %v939
        %v941 = vmul.f32 %v853, 1.442695
        %v942 = vpow.pop %v941
        %v943 = vmul.f32 %v854, 1.442695
        %v944 = vpow.pop %v943
        %v945 = vmul.f32 %v855, 1.442695
        %v946 = vpow.pop %v945
        %v947 = vmul.f32 %v856, 1.442695
        %v948 = vpow.pop %v947
        %v949 = vmul.f32 %v857, 1.442695
        %v950 = vpow.pop %v949
        %v951 = vmul.f32 %v858, 1.442695
        %v952 = vpow.pop %v951
        %v953 = vmul.f32 %v859, 1.442695
        %v954 = vpow.pop %v953
        %v955 = vmul.f32 %v860, 1.442695
        %v956 = vpow.pop %v955
        %v957 = vmul.f32 %v861, 1.442695
        %v958 = vpow.pop %v957
        %v959 = vmul.f32 %v862, 1.442695
        %v960 = vpow.pop %v959
        %v961 = vmul.f32 %v863, 1.442695
        %v962 = vpow.pop %v961
        %v963 = vmul.f32 %v864, 1.442695
        %v964 = vpow.pop %v963
        %v965 = vmul.f32 %v865, 1.442695
        %v966 = vpow.pop %v965
        %v967 = vmul.f32 %v866, 1.442695
        %v968 = vpow.pop %v967
        %v969 = vmul.f32 %v867, 1.442695
        %v970 = vpow.pop %v969
        %v971 = vmul.f32 %v868, 1.442695
        %v972 = vpow.pop %v971
        %v973 = vmul.f32 %v869, 1.442695
        %v974 = vpow.pop %v973
        %v975 = vmul.f32 %v870, 1.442695
        %v976 = vpow.pop %v975
        %v977 = vmul.f32 %v871, 1.442695
        %v978 = vpow.pop %v977
        %v979 = vmul.f32 %v872, 1.442695
        %v980 = vpow.pop %v979
        %v981 = vmul.f32 %v873, 1.442695
        %v982 = vpow.pop %v981
        %v983 = vmul.f32 %v874, 1.442695
        %v984 = vpow.pop %v983
        %v985 = vmul.f32 %v875, 1.442695
        %v986 = vpow.pop %v985
        %v987 = vmul.f32 %v876, 1.442695
        %v988 = vpow.pop %v987
        %v989 = vmul.f32 %v877, 1.442695
        %v990 = vpow.pop %v989
        %v991 = vmul.f32 %v878, 1.442695
        %v992 = vpow.pop %v991
        %v993 = vmul.f32 %v879, 1.442695
        %v994 = vpow.pop %v993
        %v995 = vmul.f32 %v880, 1.442695
        %v996 = vpow.pop %v995
        %v997 = vmul.f32 %v881, 1.442695
        %v998 = vpow.pop %v997
        %v999 = vmul.f32 %v882, 1.442695
        %v1000 = vpow.pop %v999
        %v1001 = vmul.f32 %v883, 1.442695
        %v1002 = vpow.pop %v1001
        %v1003 = vmul.f32 %v884, 1.442695
        %v1004 = vpow.pop %v1003
        %v1005 = vmul.f32 %v885, 1.442695
        %v1006 = vpow.pop %v1005
        %v1007 = vmul.f32 %v886, 1.442695
        %v1008 = vpow.pop %v1007
        %v1009 = vmul.f32 %v887, 1.442695
        %v1010 = vpow.pop %v1009
        %v1011 = vmul.f32 %v888, 1.442695
        %v1012 = vpow.pop %v1011
        %v1013 = vmul.f32 %v889, 1.442695
        %v1014 = vpow.pop %v1013
        %v1015 = vmul.f32 %v890, 1.442695
        %v1016 = vpow.pop %v1015
        %v1017 = vmul.f32 %v891, 1.442695
        %v1018 = vpow.pop %v1017
        %v1019 = vmul.f32 %v892, 1.442695
        %v1020 = vpow.pop %v1019
        %v1021 = vadd.f32 %v894, %v896
        %1022 = vadd.xlane.f32.xlu0 %v1021
        %v1023 = vpop.xlane.xlu0 %1022
        %v1024 = vadd.f32 %v898, %v900
        %1025 = vadd.xlane.f32.xlu0 %v1024
        %v1026 = vpop.xlane.xlu0 %1025
        %v1027 = vadd.f32 %v902, %v904
        %1028 = vadd.xlane.f32.xlu0 %v1027
        %v1029 = vpop.xlane.xlu0 %1028
        %v1030 = vadd.f32 %v906, %v908
        %1031 = vadd.xlane.f32.xlu0 %v1030
        %v1032 = vpop.xlane.xlu0 %1031
        %v1033 = vadd.f32 %v910, %v912
        %1034 = vadd.xlane.f32.xlu0 %v1033
        %v1035 = vpop.xlane.xlu0 %1034
        %v1036 = vadd.f32 %v914, %v916
        %1037 = vadd.xlane.f32.xlu0 %v1036
        %v1038 = vpop.xlane.xlu0 %1037
        %v1039 = vadd.f32 %v918, %v920
        %1040 = vadd.xlane.f32.xlu0 %v1039
        %v1041 = vpop.xlane.xlu0 %1040
        %v1042 = vadd.f32 %v922, %v924
        %1043 = vadd.xlane.f32.xlu0 %v1042
        %v1044 = vpop.xlane.xlu0 %1043
        %v1045 = vadd.f32 %v926, %v928
        %1046 = vadd.xlane.f32.xlu0 %v1045
        %v1047 = vpop.xlane.xlu0 %1046
        %v1048 = vadd.f32 %v930, %v932
        %1049 = vadd.xlane.f32.xlu0 %v1048
        %v1050 = vpop.xlane.xlu0 %1049
        %v1051 = vadd.f32 %v934, %v936
        %1052 = vadd.xlane.f32.xlu0 %v1051
        %v1053 = vpop.xlane.xlu0 %1052
        %v1054 = vadd.f32 %v938, %v940
        %1055 = vadd.xlane.f32.xlu0 %v1054
        %v1056 = vpop.xlane.xlu0 %1055
        %v1057 = vadd.f32 %v942, %v944
        %1058 = vadd.xlane.f32.xlu0 %v1057
        %v1059 = vpop.xlane.xlu0 %1058
        %v1060 = vadd.f32 %v946, %v948
        %1061 = vadd.xlane.f32.xlu0 %v1060
        %v1062 = vpop.xlane.xlu0 %1061
        %v1063 = vadd.f32 %v950, %v952
        %1064 = vadd.xlane.f32.xlu0 %v1063
        %v1065 = vpop.xlane.xlu0 %1064
        %v1066 = vadd.f32 %v954, %v956
        %1067 = vadd.xlane.f32.xlu0 %v1066
        %v1068 = vpop.xlane.xlu0 %1067
        %v1069 = vadd.f32 %v958, %v960
        %1070 = vadd.xlane.f32.xlu0 %v1069
        %v1071 = vpop.xlane.xlu0 %1070
        %v1072 = vadd.f32 %v962, %v964
        %1073 = vadd.xlane.f32.xlu0 %v1072
        %v1074 = vpop.xlane.xlu0 %1073
        %v1075 = vadd.f32 %v966, %v968
        %1076 = vadd.xlane.f32.xlu0 %v1075
        %v1077 = vpop.xlane.xlu0 %1076
        %v1078 = vadd.f32 %v970, %v972
        %1079 = vadd.xlane.f32.xlu0 %v1078
        %v1080 = vpop.xlane.xlu0 %1079
        %v1081 = vadd.f32 %v974, %v976
        %1082 = vadd.xlane.f32.xlu0 %v1081
        %v1083 = vpop.xlane.xlu0 %1082
        %v1084 = vadd.f32 %v978, %v980
        %1085 = vadd.xlane.f32.xlu0 %v1084
        %v1086 = vpop.xlane.xlu0 %1085
        %v1087 = vadd.f32 %v982, %v984
        %1088 = vadd.xlane.f32.xlu0 %v1087
        %v1089 = vpop.xlane.xlu0 %1088
        %v1090 = vadd.f32 %v986, %v988
        %1091 = vadd.xlane.f32.xlu0 %v1090
        %v1092 = vpop.xlane.xlu0 %1091
        %v1093 = vadd.f32 %v990, %v992
        %1094 = vadd.xlane.f32.xlu0 %v1093
        %v1095 = vpop.xlane.xlu0 %1094
        %v1096 = vadd.f32 %v994, %v996
        %1097 = vadd.xlane.f32.xlu0 %v1096
        %v1098 = vpop.xlane.xlu0 %1097
        %v1099 = vadd.f32 %v998, %v1000
        %1100 = vadd.xlane.f32.xlu0 %v1099
        %v1101 = vpop.xlane.xlu0 %1100
        %v1102 = vadd.f32 %v1002, %v1004
        %1103 = vadd.xlane.f32.xlu0 %v1102
        %v1104 = vpop.xlane.xlu0 %1103
        %v1105 = vadd.f32 %v1006, %v1008
        %1106 = vadd.xlane.f32.xlu0 %v1105
        %v1107 = vpop.xlane.xlu0 %1106
        %v1108 = vadd.f32 %v1010, %v1012
        %1109 = vadd.xlane.f32.xlu0 %v1108
        %v1110 = vpop.xlane.xlu0 %1109
        %v1111 = vadd.f32 %v1014, %v1016
        %1112 = vadd.xlane.f32.xlu0 %v1111
        %v1113 = vpop.xlane.xlu0 %1112
        %v1114 = vadd.f32 %v1018, %v1020
        %1115 = vadd.xlane.f32.xlu0 %v1114
        %v1116 = vpop.xlane.xlu0 %1115
        %v1117 = vrcp.pop %v1023
        %v1118 = vrcp.pop %v1026
        %v1119 = vrcp.pop %v1029
        %v1120 = vrcp.pop %v1032
        %v1121 = vrcp.pop %v1035
        %v1122 = vrcp.pop %v1038
        %v1123 = vrcp.pop %v1041
        %v1124 = vrcp.pop %v1044
        %v1125 = vrcp.pop %v1047
        %v1126 = vrcp.pop %v1050
        %v1127 = vrcp.pop %v1053
        %v1128 = vrcp.pop %v1056
        %v1129 = vrcp.pop %v1059
        %v1130 = vrcp.pop %v1062
        %v1131 = vrcp.pop %v1065
        %v1132 = vrcp.pop %v1068
        %v1133 = vrcp.pop %v1071
        %v1134 = vrcp.pop %v1074
        %v1135 = vrcp.pop %v1077
        %v1136 = vrcp.pop %v1080
        %v1137 = vrcp.pop %v1083
        %v1138 = vrcp.pop %v1086
        %v1139 = vrcp.pop %v1089
        %v1140 = vrcp.pop %v1092
        %v1141 = vrcp.pop %v1095
        %v1142 = vrcp.pop %v1098
        %v1143 = vrcp.pop %v1101
        %v1144 = vrcp.pop %v1104
        %v1145 = vrcp.pop %v1107
        %v1146 = vrcp.pop %v1110
        %v1147 = vrcp.pop %v1113
        %v1148 = vrcp.pop %v1116
        %v1149 = vmul.f32 %v894, %v1117
        %v1150 = vmul.f32 %v896, %v1117
        %v1151 = vmul.f32 %v898, %v1118
        %v1152 = vmul.f32 %v900, %v1118
        %v1153 = vmul.f32 %v902, %v1119
        %v1154 = vmul.f32 %v904, %v1119
        %v1155 = vmul.f32 %v906, %v1120
        %v1156 = vmul.f32 %v908, %v1120
        %v1157 = vmul.f32 %v910, %v1121
        %v1158 = vmul.f32 %v912, %v1121
        %v1159 = vmul.f32 %v914, %v1122
        %v1160 = vmul.f32 %v916, %v1122
        %v1161 = vmul.f32 %v918, %v1123
        %v1162 = vmul.f32 %v920, %v1123
        %v1163 = vmul.f32 %v922, %v1124
        %v1164 = vmul.f32 %v924, %v1124
        %v1165 = vmul.f32 %v926, %v1125
        %v1166 = vmul.f32 %v928, %v1125
        %v1167 = vmul.f32 %v930, %v1126
        %v1168 = vmul.f32 %v932, %v1126
        %v1169 = vmul.f32 %v934, %v1127
        %v1170 = vmul.f32 %v936, %v1127
        %v1171 = vmul.f32 %v938, %v1128
        %v1172 = vmul.f32 %v940, %v1128
        %v1173 = vmul.f32 %v942, %v1129
        %v1174 = vmul.f32 %v944, %v1129
        %v1175 = vmul.f32 %v946, %v1130
        %v1176 = vmul.f32 %v948, %v1130
        %v1177 = vmul.f32 %v950, %v1131
        %v1178 = vmul.f32 %v952, %v1131
        %v1179 = vmul.f32 %v954, %v1132
        %v1180 = vmul.f32 %v956, %v1132
        %v1181 = vmul.f32 %v958, %v1133
        %v1182 = vmul.f32 %v960, %v1133
        %v1183 = vmul.f32 %v962, %v1134
        %v1184 = vmul.f32 %v964, %v1134
        %v1185 = vmul.f32 %v966, %v1135
        %v1186 = vmul.f32 %v968, %v1135
        %v1187 = vmul.f32 %v970, %v1136
        %v1188 = vmul.f32 %v972, %v1136
        %v1189 = vmul.f32 %v974, %v1137
        %v1190 = vmul.f32 %v976, %v1137
        %v1191 = vmul.f32 %v978, %v1138
        %v1192 = vmul.f32 %v980, %v1138
        %v1193 = vmul.f32 %v982, %v1139
        %v1194 = vmul.f32 %v984, %v1139
        %v1195 = vmul.f32 %v986, %v1140
        %v1196 = vmul.f32 %v988, %v1140
        %v1197 = vmul.f32 %v990, %v1141
        %v1198 = vmul.f32 %v992, %v1141
        %v1199 = vmul.f32 %v994, %v1142
        %v1200 = vmul.f32 %v996, %v1142
        %v1201 = vmul.f32 %v998, %v1143
        %v1202 = vmul.f32 %v1000, %v1143
        %v1203 = vmul.f32 %v1002, %v1144
        %v1204 = vmul.f32 %v1004, %v1144
        %v1205 = vmul.f32 %v1006, %v1145
        %v1206 = vmul.f32 %v1008, %v1145
        %v1207 = vmul.f32 %v1010, %v1146
        %v1208 = vmul.f32 %v1012, %v1146
        %v1209 = vmul.f32 %v1014, %v1147
        %v1210 = vmul.f32 %v1016, %v1147
        %v1211 = vmul.f32 %v1018, %v1148
        %v1212 = vmul.f32 %v1020, %v1148
        %1213 = vst [vmem:[%s256] sm:$0xff] %v1149
        %1214 = vst [vmem:[%s256 + $0x8] sm:$0xff] %v1150
        %1215 = vst [vmem:[%s256 + $0x10] sm:$0xff] %v1151
        %1216 = vst [vmem:[%s256 + $0x18] sm:$0xff] %v1152
        %1217 = vst [vmem:[%s256 + $0x20] sm:$0xff] %v1153
        %1218 = vst [vmem:[%s256 + $0x28] sm:$0xff] %v1154
        %1219 = vst [vmem:[%s256 + $0x30] sm:$0xff] %v1155
        %1220 = vst [vmem:[%s256 + $0x38] sm:$0xff] %v1156
        %1221 = vst [vmem:[%s256 + $0x40] sm:$0xff] %v1157
        %1222 = vst [vmem:[%s256 + $0x48] sm:$0xff] %v1158
        %1223 = vst [vmem:[%s256 + $0x50] sm:$0xff] %v1159
        %1224 = vst [vmem:[%s256 + $0x58] sm:$0xff] %v1160
        %1225 = vst [vmem:[%s256 + $0x60] sm:$0xff] %v1161
        %1226 = vst [vmem:[%s256 + $0x68] sm:$0xff] %v1162
        %1227 = vst [vmem:[%s256 + $0x70] sm:$0xff] %v1163
        %1228 = vst [vmem:[%s256 + $0x78] sm:$0xff] %v1164
        %1229 = vst [vmem:[%s256 + $0x80] sm:$0xff] %v1165
        %1230 = vst [vmem:[%s256 + $0x88] sm:$0xff] %v1166
        %1231 = vst [vmem:[%s256 + $0x90] sm:$0xff] %v1167
        %1232 = vst [vmem:[%s256 + $0x98] sm:$0xff] %v1168
        %1233 = vst [vmem:[%s256 + $0xa0] sm:$0xff] %v1169
        %1234 = vst [vmem:[%s256 + $0xa8] sm:$0xff] %v1170
        %1235 = vst [vmem:[%s256 + $0xb0] sm:$0xff] %v1171
        %1236 = vst [vmem:[%s256 + $0xb8] sm:$0xff] %v1172
        %1237 = vst [vmem:[%s256 + $0xc0] sm:$0xff] %v1173
        %1238 = vst [vmem:[%s256 + $0xc8] sm:$0xff] %v1174
        %1239 = vst [vmem:[%s256 + $0xd0] sm:$0xff] %v1175
        %1240 = vst [vmem:[%s256 + $0xd8] sm:$0xff] %v1176
        %1241 = vst [vmem:[%s256 + $0xe0] sm:$0xff] %v1177
        %1242 = vst [vmem:[%s256 + $0xe8] sm:$0xff] %v1178
        %1243 = vst [vmem:[%s256 + $0xf0] sm:$0xff] %v1179
        %1244 = vst [vmem:[%s256 + $0xf8] sm:$0xff] %v1180
        %1245 = vst [vmem:[%s256 + $0x100] sm:$0xff] %v1181
        %1246 = vst [vmem:[%s256 + $0x108] sm:$0xff] %v1182
        %1247 = vst [vmem:[%s256 + $0x110] sm:$0xff] %v1183
        %1248 = vst [vmem:[%s256 + $0x118] sm:$0xff] %v1184
        %1249 = vst [vmem:[%s256 + $0x120] sm:$0xff] %v1185
        %1250 = vst [vmem:[%s256 + $0x128] sm:$0xff] %v1186
        %1251 = vst [vmem:[%s256 + $0x130] sm:$0xff] %v1187
        %1252 = vst [vmem:[%s256 + $0x138] sm:$0xff] %v1188
        %1253 = vst [vmem:[%s256 + $0x140] sm:$0xff] %v1189
        %1254 = vst [vmem:[%s256 + $0x148] sm:$0xff] %v1190
        %1255 = vst [vmem:[%s256 + $0x150] sm:$0xff] %v1191
        %1256 = vst [vmem:[%s256 + $0x158] sm:$0xff] %v1192
        %1257 = vst [vmem:[%s256 + $0x160] sm:$0xff] %v1193
        %1258 = vst [vmem:[%s256 + $0x168] sm:$0xff] %v1194
        %1259 = vst [vmem:[%s256 + $0x170] sm:$0xff] %v1195
        %1260 = vst [vmem:[%s256 + $0x178] sm:$0xff] %v1196
        %1261 = vst [vmem:[%s256 + $0x180] sm:$0xff] %v1197
        %1262 = vst [vmem:[%s256 + $0x188] sm:$0xff] %v1198
        %1263 = vst [vmem:[%s256 + $0x190] sm:$0xff] %v1199
        %1264 = vst [vmem:[%s256 + $0x198] sm:$0xff] %v1200
        %1265 = vst [vmem:[%s256 + $0x1a0] sm:$0xff] %v1201
        %1266 = vst [vmem:[%s256 + $0x1a8] sm:$0xff] %v1202
        %1267 = vst [vmem:[%s256 + $0x1b0] sm:$0xff] %v1203
        %1268 = vst [vmem:[%s256 + $0x1b8] sm:$0xff] %v1204
        %1269 = vst [vmem:[%s256 + $0x1c0] sm:$0xff] %v1205
        %1270 = vst [vmem:[%s256 + $0x1c8] sm:$0xff] %v1206
        %1271 = vst [vmem:[%s256 + $0x1d0] sm:$0xff] %v1207
        %1272 = vst [vmem:[%s256 + $0x1d8] sm:$0xff] %v1208
        %1273 = vst [vmem:[%s256 + $0x1e0] sm:$0xff] %v1209
        %1274 = vst [vmem:[%s256 + $0x1e8] sm:$0xff] %v1210
        %1275 = vst [vmem:[%s256 + $0x1f0] sm:$0xff] %v1211
        %1276 = vst [vmem:[%s256 + $0x1f8] sm:$0xff] %v1212
        %v1277 = vld [vmem:[%s224] sm:$0xff]
        %v1279 = vcombine.high %v1277, %v1277
        %1281 = vmatprep.subr.mxu0 %v1150
        %1282 = vmatpush1.xpose.msra.mxu0 %v1149
        %1283 = vmatprep.subr.mxu0 %v1152
        %1284 = vmatpush1.xpose.msra.mxu0 %v1151
        %1285 = vmatprep.subr.mxu0 %v1154
        %1286 = vmatpush1.xpose.msra.mxu0 %v1153
        %1287 = vmatprep.subr.mxu0 %v1156
        %1288 = vmatpush1.xpose.msra.mxu0 %v1155
        %1289 = vmatprep.subr.mxu0 %v1158
        %1290 = vmatpush1.xpose.msra.mxu0 %v1157
        %1291 = vmatprep.subr.mxu0 %v1160
        %1292 = vmatpush1.xpose.msra.mxu0 %v1159
        %1293 = vmatprep.subr.mxu0 %v1162
        %1294 = vmatpush1.xpose.msra.mxu0 %v1161
        %1295 = vmatprep.subr.mxu0 %v1164
        %1296 = vmatpush1.xpose.msra.mxu0 %v1163
        %1297 = vmatprep.subr.mxu0 %v1166
        %1298 = vmatpush1.xpose.msra.mxu0 %v1165
        %1299 = vmatprep.subr.mxu0 %v1168
        %1300 = vmatpush1.xpose.msra.mxu0 %v1167
        %1301 = vmatprep.subr.mxu0 %v1170
        %1302 = vmatpush1.xpose.msra.mxu0 %v1169
        %1303 = vmatprep.subr.mxu0 %v1172
        %1304 = vmatpush1.xpose.msra.mxu0 %v1171
        %1305 = vmatprep.subr.mxu0 %v1174
        %1306 = vmatpush1.xpose.msra.mxu0 %v1173
        %1307 = vmatprep.subr.mxu0 %v1176
        %1308 = vmatpush1.xpose.msra.mxu0 %v1175
        %1309 = vmatprep.subr.mxu0 %v1178
        %1310 = vmatpush1.xpose.msra.mxu0 %v1177
        %1311 = vmatprep.subr.mxu0 %v1180
        %1312 = vmatpush1.xpose.msra.mxu0 %v1179
        %1313 = vmatprep.subr.mxu0 %v1182
        %1314 = vmatpush1.xpose.msra.mxu0 %v1181
        %1315 = vmatprep.subr.mxu0 %v1184
        %1316 = vmatpush1.xpose.msra.mxu0 %v1183
        %1317 = vmatprep.subr.mxu0 %v1186
        %1318 = vmatpush1.xpose.msra.mxu0 %v1185
        %1319 = vmatprep.subr.mxu0 %v1188
        %1320 = vmatpush1.xpose.msra.mxu0 %v1187
        %1321 = vmatprep.subr.mxu0 %v1190
        %1322 = vmatpush1.xpose.msra.mxu0 %v1189
        %1323 = vmatprep.subr.mxu0 %v1192
        %1324 = vmatpush1.xpose.msra.mxu0 %v1191
        %1325 = vmatprep.subr.mxu0 %v1194
        %1326 = vmatpush1.xpose.msra.mxu0 %v1193
        %1327 = vmatprep.subr.mxu0 %v1196
        %1328 = vmatpush1.xpose.msra.mxu0 %v1195
        %1329 = vmatprep.subr.mxu0 %v1198
        %1330 = vmatpush1.xpose.msra.mxu0 %v1197
        %1331 = vmatprep.subr.mxu0 %v1200
        %1332 = vmatpush1.xpose.msra.mxu0 %v1199
        %1333 = vmatprep.subr.mxu0 %v1202
        %1334 = vmatpush1.xpose.msra.mxu0 %v1201
        %1335 = vmatprep.subr.mxu0 %v1204
        %1336 = vmatpush1.xpose.msra.mxu0 %v1203
        %1337 = vmatprep.subr.mxu0 %v1206
        %1338 = vmatpush1.xpose.msra.mxu0 %v1205
        %1339 = vmatprep.subr.mxu0 %v1208
        %1340 = vmatpush1.xpose.msra.mxu0 %v1207
        %1341 = vmatprep.subr.mxu0 %v1210
        %1342 = vmatpush1.xpose.msra.mxu0 %v1209
        %1343 = vmatprep.subr.mxu0 %v1212
        %1344 = vmatpush1.xpose.msra.mxu0 %v1211
        %1345 = vmatprep.mubr.f32.mxu0 %v1279
        %1346 = vmatmul.mubr.f32.gmra.mrb[0].mxu0 %v1277
        %v1347 = vpop.f32.mrb[0].mxu0
        %v1348 = vadd.f32 0.0, %v1347
        %v1349 = vpop.f32.mrb[0].mxu0
        %v1350 = vadd.f32 0.0, %v1349
        %1351 = vdwg.mxu0
        %v1352 = vstv %s260
        %v1353 = vmul.f32 %v1352, %v1348
        %v1354 = vmul.f32 %v1352, %v1350
        %s1355 = smul.addr %s298, 4
        %s1356 = scalar_lea.vmem %s224, %s1355 [#allocation8]
        %v1357 = vld [vmem:[%s1356] sm:$0xff]
        %v1358 = vstv %s261
        %v1359 = vmul.f32 %v1358, %v1357
        %v1361 = vcombine.high %v1359, %v1359
        %v1363 = vadd.f32 %v1353, %v1359
        %v1364 = vadd.f32 %v1354, %v1361
        %v1367 = vcombine.low %v1363, %v1364
        %1369 = vst [vmem:[%s249] sm:$0xff] %v1367
        %s1370 = sand.u32 %s106, 1
        %s1371 = scalar_lea.sflag [#allocation7], %s1370
        %s1372 = sand.u32 %s106, 1
        %s1373 = smul.addr %s1372, 8
        %s1374 = scalar_lea.vmem [#allocation10], %s1373
        %s1375 = sand.u32 %s134, 1
        %s1376 = scalar_lea.sflag [#allocation12], %s1375
        %s1377 = sand.u32 %s134, 1
        %s1378 = smul.addr %s1377, 512
        %s1379 = scalar_lea.vmem [#allocation11], %s1378
        // Predicated region
        $region41: #{tpu_custom_call.1} parent=27 // pred_check
          %p1380 = pneg %p116
        $region42: #{tpu_custom_call.1} parent=27 // pred_check_branch
          %1382 = sbr.rel (%p1380) target = $region44
        $region43: #{tpu_custom_call.1} parent=27 // pred_region
          %s1383 = smul.u32 2, %s37
          %s1385 = ssub.s32 128, 128
          %1386 = vsyncadd %s1371, %s1385
          %s1387 = smul.addr %s36, 2
          %s1388 = sadd.s32 %s1383, %s1387
          %s1389 = smul.addr %s1388, 64
          %s1390 = scalar_lea.hbm %s3, %s1389
          %s1392 = sshll.u32 %s1374, 4
          %s1393 = int_to_ptr.vmem [resolvable:$true] %s1392
          %1395 = dma.vmem_to_hbm [thread:$0]  %s1393, 128, %s1390, %s1371
        $region44: #{tpu_custom_call.1} parent=27 // pred_fallthru
          _
        // Predicated region
        $region45: #{tpu_custom_call.1} parent=27 // pred_check
          %p1396 = pneg %p144
        $region46: #{tpu_custom_call.1} parent=27 // pred_check_branch
          %1398 = sbr.rel (%p1396) target = $region48
        $region47: #{tpu_custom_call.1} parent=27 // pred_region
          %s1399 = smul.u32 32, %s37
          %s1401 = ssub.s32 8192, 8192
          %1402 = vsyncadd %s1376, %s1401
          %s1403 = smul.addr %s1399, 2
          %s1404 = smul.addr %s36, 64
          %s1405 = sadd.s32 %s1403, %s1404
          %s1406 = smul.addr %s1405, 128
          %s1407 = scalar_lea.hbm %s4, %s1406
          %s1408 = sshll.u32 %s1379, 4
          %s1409 = int_to_ptr.vmem [resolvable:$true] %s1408
          %1414 = dma.vmem_to_hbm [thread:$0]  %s1409, 8192, %s1407, %s1376, 256, 256, 16
        $region48: #{tpu_custom_call.1} parent=27 // pred_fallthru
          _
      $region28: #{tpu_custom_call.1} parent=5 // pred_fallthru
        _
      %p1415 = scmp.le.s32.totalorder 2, %s27
      // Predicated region
      $region49: #{tpu_custom_call.1} parent=5 // pred_check
        %p1416 = pneg %p1415
      $region50: #{tpu_custom_call.1} parent=5 // pred_check_branch
        %1418 = sbr.rel (%p1416) target = $region52
      $region51: #{tpu_custom_call.1} parent=5 // pred_region
        %s1419 = ssub.s32 %s27, 2
        // Predicated region
        $region53: #{tpu_custom_call.1} parent=51 // pred_check
          %p1420 = pneg %p122
        $region54: #{tpu_custom_call.1} parent=51 // pred_check_branch
          %1422 = sbr.rel (%p1420) target = $region56
        $region55: #{tpu_custom_call.1} parent=51 // pred_region
          %s1423 = sand.u32 %s107, 1
          %s1424 = scalar_lea.sflag [#allocation7], %s1423
          %s1425 = sand.u32 %s107, 1
          %s1426 = smul.addr %s1425, 8
          %s1427 = scalar_lea.vmem [#allocation10], %s1426
          %1428 = dma.done %s1424, 128
        $region56: #{tpu_custom_call.1} parent=51 // pred_fallthru
          _
        // Predicated region
        $region57: #{tpu_custom_call.1} parent=51 // pred_check
          %p1429 = pneg %p150
        $region58: #{tpu_custom_call.1} parent=51 // pred_check_branch
          %1431 = sbr.rel (%p1429) target = $region60
        $region59: #{tpu_custom_call.1} parent=51 // pred_region
          %s1432 = sand.u32 %s135, 1
          %s1433 = scalar_lea.sflag [#allocation12], %s1432
          %s1434 = sand.u32 %s135, 1
          %s1435 = smul.addr %s1434, 512
          %s1436 = scalar_lea.vmem [#allocation11], %s1435
          %1437 = dma.done %s1433, 8192
        $region60: #{tpu_custom_call.1} parent=51 // pred_fallthru
          _
      $region52: #{tpu_custom_call.1} parent=5 // pred_fallthru
        _
    $region6: #{tpu_custom_call.1} parent=1 // loop_footer
      %s31 = sadd.s32 1, %s27
    $region7: #{tpu_custom_call.1} parent=1 // loop_footer_branch
      %26 = sbr.rel target = $region3
    $region8: #{tpu_custom_call.1} parent=1 // loop_exit
      _
    %1438 = vsyncpa [#allocation6], 1
    %s1439 = scalar_lea.sflag [#allocation6], 1
    %1440 = vsyncpa %s1439, 1
    %1441 = vsyncpa [#allocation9], 1
    %s1442 = scalar_lea.sflag [#allocation9], 1
    %1443 = vsyncpa %s1442, 1
    %1444 = vsyncpa [#allocation7], 1
    %s1445 = scalar_lea.sflag [#allocation7], 1
    %1446 = vsyncpa %s1445, 1
    %1447 = vsyncpa [#allocation12], 1
    %s1448 = scalar_lea.sflag [#allocation12], 1
    %1449 = vsyncpa %s1448, 1

</llo_original>
